<compile_context>
chip_gen: v7x
topology: tpu7x:2x2x1
jax: 0.10.0
libtpu: 0.0.40
codegen_flags: <defaults>
</compile_context>

<pallas_src>
import functools

import jax
import jax.numpy as jnp
from jax.experimental import pallas as pl
from jax.experimental.pallas import tpu as pltpu

HIDDEN = 2048   # default hidden width of the module (nn.Linear(encoder_dim*k, 2048))


# ----------------------------------------------------------------------------
# Kernels
# ----------------------------------------------------------------------------
def _mlp_kernel_fused(x_ref, w1_ref, b1_ref, w2_ref, b2_ref, o_ref):
    # x_ref : (TM, Kp) bf16, w1_ref : (Kp, H) bf16, b1_ref : (1, H) f32
    # w2_ref: (H, Np)  bf16, b2_ref : (1, Np) f32, o_ref : (TM, Np)
    h = jnp.dot(x_ref[...], w1_ref[...], preferred_element_type=jnp.float32)
    h = jnp.maximum(h + b1_ref[...], 0.0)          # bias + ReLU in f32
    h = h.astype(w2_ref.dtype)                      # bf16 into second MXU pass
    o = jnp.dot(h, w2_ref[...], preferred_element_type=jnp.float32)
    o_ref[...] = (o + b2_ref[...]).astype(o_ref.dtype)


def _mlp_kernel_stream(x_ref, w1_ref, b1_ref, w2_ref, b2_ref, o_ref, h_ref):
    # Grid = (row tiles, N tiles). W2/b2/out are column-tiled; the hidden
    # activation for the current row tile is computed once (j == 0) into a
    # persistent VMEM scratch and reused for every N tile.
    @pl.when(pl.program_id(1) == 0)
    def _():
        h = jnp.dot(x_ref[...], w1_ref[...], preferred_element_type=jnp.float32)
        h_ref[...] = jnp.maximum(h + b1_ref[...], 0.0).astype(h_ref.dtype)

    o = jnp.dot(h_ref[...], w2_ref[...], preferred_element_type=jnp.float32)
    o_ref[...] = (o + b2_ref[...]).astype(o_ref.dtype)


# ----------------------------------------------------------------------------
# Spec / planning helpers
# ----------------------------------------------------------------------------
def _resident_spec(shape, grid_ndim):
    """BlockSpec for an operand whose block index never changes across the grid.

    Request single buffering (no point double-buffering a constant block);
    fall back silently if this JAX build does not accept pipeline_mode.
    """
    if grid_ndim == 1:
        index_map = lambda i: (0,) * len(shape)
    else:
        index_map = lambda i, j: (0,) * len(shape)
    if hasattr(pl, "Buffered"):
        try:
            return pl.BlockSpec(shape, index_map, pipeline_mode=pl.Buffered(1))
        except TypeError:
            pass
    return pl.BlockSpec(shape, index_map)


def _vmem_cap_bytes():
    """Per-chip usable VMEM budget (7/8 of physical: 112 MiB v5e/v6e, 56 MiB v7x)."""
    phys = 128 << 20
    try:
        info = pltpu.get_tpu_info()
        phys = int(getattr(info, "vmem_capacity_bytes", phys))
    except Exception:
        pass
    return (phys // 8) * 7


def _choose_plan(M, Kp, hidden, Np, out_itemsize, cap, *,
                 force_stream=False, stream_tn=None):
    """Pick (mode, tm, tn, vmem_need) against the per-chip VMEM budget."""
    m8 = pl.cdiv(max(M, 1), 8) * 8

    def fused_need(tm):
        return (Kp * hidden * 2 + hidden * Np * 2 + (hidden + Np) * 4  # resident w/b
                + tm * Kp * 2 * 2                 # X row tiles (double-buffered)
                + tm * Np * out_itemsize * 2      # out tiles (double-buffered)
                + tm * hidden * 4                 # f32 hidden intermediate (single)
                + tm * Np * 4)                    # f32 out intermediate pre-cast

    def stream_need(tm, tn):
        return (Kp * hidden * 2 + hidden * 4      # resident W1 + b1
                + tm * Kp * 2 * 2                 # X tile
                + hidden * tn * 2 * 2 + tn * 4 * 2  # streamed W2 / b2 tiles
                + tm * tn * out_itemsize * 2      # out tiles
                + tm * hidden * 2                 # bf16 hidden scratch
                + tm * hidden * 4                 # f32 hidden intermediate at j==0
                + tm * tn * 4)                    # f32 out intermediate

    if m8 <= 512:
        fused_tms = [m8]
        stream_tms = [m8]
    else:
        # Large row tiles amortize the ~0.35us/step overhead and keep the MXU busy.
        fused_tms = [512, 256, 128]
        stream_tms = [256, 128]

    if not force_stream:
        for tm in fused_tms:
            need = fused_need(tm)
            if need <= cap:
                return "fused", tm, None, need

    # W2-streaming fallback (resident-both-weights does not fit, e.g. v7x with
    # large K or llm_dim).
    if stream_tn is not None and Np % stream_tn == 0:
        tn = stream_tn
    elif Np % 512 == 0:
        tn = 512
    elif Np % 256 == 0:
        tn = 256
    else:
        tn = 128
    for tm in stream_tms:
        need = stream_need(tm, tn)
        if need <= cap:
            return "stream", tm, tn, need
    # Nothing fits comfortably: smallest config, let the compiler try anyway.
    tm = stream_tms[-1]
    return "stream", tm, 128, stream_need(tm, 128)


# ----------------------------------------------------------------------------
# Fused MLP wrapper
# ----------------------------------------------------------------------------
def _projector_mlp(x2d, w1, b1, w2, b2, *, out_dtype,
                   force_stream=False, stream_tn=None):
    """relu(x2d @ w1 + b1) @ w2 + b2 as a Pallas kernel (fused or W2-streamed)."""
    M, K = x2d.shape
    hidden = w1.shape[1]
    N = w2.shape[1]
    assert w1.shape[0] == K, (w1.shape, K)
    assert w2.shape[0] == hidden, (w2.shape, hidden)
    assert b1.size == hidden and b2.size == N, (b1.shape, b2.shape)

    # bf16 activations/weights (MXU-native, halves weight VMEM + HBM traffic);
    # f32 biases; f32 accumulation inside the kernel.
    x2d = x2d.astype(jnp.bfloat16)
    w1 = w1.astype(jnp.bfloat16)
    w2 = w2.astype(jnp.bfloat16)
    b1 = b1.astype(jnp.float32).reshape(1, hidden)
    b2 = b2.astype(jnp.float32).reshape(1, N)
    # TODO(synk): optional fp8 weight path for v7x (halves resident-weight VMEM).

    # Dense contraction dim: zero-pad K up to a multiple of 128 (X columns and
    # W1 rows); fuses with the wrapper-side reshape copy.
    Kp = max(128, pl.cdiv(K, 128) * 128)
    if Kp != K:
        x2d = jnp.pad(x2d, ((0, 0), (0, Kp - K)))
        w1 = jnp.pad(w1, ((0, Kp - K), (0, 0)))

    # Lane-dense output: pad llm_dim to 128 (small) or a multiple of 256
    # (full-width MXU output tiles on v6e/v7x). Padded columns are zero.
    Np = 128 if N <= 128 else pl.cdiv(N, 256) * 256
    if Np != N:
        w2 = jnp.pad(w2, ((0, 0), (0, Np - N)))
        b2 = jnp.pad(b2, ((0, 0), (0, Np - N)))

    out_itemsize = jnp.dtype(out_dtype).itemsize
    cap = _vmem_cap_bytes()
    mode, tm, tn, need = _choose_plan(M, Kp, hidden, Np, out_itemsize, cap,
                                      force_stream=force_stream,
                                      stream_tn=stream_tn)

    # Advisory cost estimate so XLA schedules surrounding glue sensibly.
    flops = 2 * M * Kp * hidden + 2 * M * hidden * Np
    bytes_accessed = (M * Kp * 2 + Kp * hidden * 2 + hidden * Np * 2
                      + hidden * 4 + Np * 4 + M * Np * out_itemsize)
    cost = pl.CostEstimate(flops=flops, transcendentals=0,
                           bytes_accessed=bytes_accessed)
    vmem_limit = int(min(cap, max(32 << 20, int(need * 1.25) + (2 << 20))))

    compiler_params_common = dict(vmem_limit_bytes=vmem_limit)

    if mode == "fused":
        grid = (pl.cdiv(M, tm),)   # ragged last tile handled by Pallas (no X pad pass)
        out = pl.pallas_call(
            _mlp_kernel_fused,
            out_shape=jax.ShapeDtypeStruct((M, Np), out_dtype),
            grid_spec=pltpu.PrefetchScalarGridSpec(
                num_scalar_prefetch=0,
                grid=grid,
                in_specs=[
                    pl.BlockSpec((tm, Kp), lambda i: (i, 0)),   # X row tile
                    _resident_spec((Kp, hidden), 1),            # W1 (resident)
                    _resident_spec((1, hidden), 1),             # b1
                    _resident_spec((hidden, Np), 1),            # W2 (resident)
                    _resident_spec((1, Np), 1),                 # b2
                ],
                out_specs=pl.BlockSpec((tm, Np), lambda i: (i, 0)),
            ),
            compiler_params=pltpu.CompilerParams(
                dimension_semantics=("parallel",),               # megacore shards rows
                **compiler_params_common,
            ),
            cost_estimate=cost,
        )(x2d, w1, b1, w2, b2)
    else:
        grid = (pl.cdiv(M, tm), Np // tn)
        out = pl.pallas_call(
            _mlp_kernel_stream,
            out_shape=jax.ShapeDtypeStruct((M, Np), out_dtype),
            grid_spec=pltpu.PrefetchScalarGridSpec(
                num_scalar_prefetch=0,
                grid=grid,
                in_specs=[
                    pl.BlockSpec((tm, Kp), lambda i, j: (i, 0)),  # X row tile (held over j)
                    _resident_spec((Kp, hidden), 2),              # W1 (resident)
                    _resident_spec((1, hidden), 2),               # b1
                    pl.BlockSpec((hidden, tn), lambda i, j: (0, j)),  # W2 column tile
                    pl.BlockSpec((1, tn), lambda i, j: (0, j)),       # b2 column tile
                ],
                out_specs=pl.BlockSpec((tm, tn), lambda i, j: (i, j)),
                scratch_shapes=[pltpu.VMEM((tm, hidden), jnp.bfloat16)],
            ),
            compiler_params=pltpu.CompilerParams(
                dimension_semantics=("parallel", "arbitrary"),
                **compiler_params_common,
            ),
            cost_estimate=cost,
        )(x2d, w1, b1, w2, b2)

    return out[:, :N]


# ----------------------------------------------------------------------------
# Module forward
# ----------------------------------------------------------------------------
def encoder_projector_concat(x, params, k, *, out_dtype=None,
                             force_stream=False, stream_tn=None):
    """Pallas-backed forward pass matching EncoderProjectorConcat.forward.

    out_dtype defaults to bfloat16 (halves output HBM writeback / VMEM);
    pass out_dtype=jnp.float32 for a full-precision output store.
    """
    w1, b1, w2, b2 = params["w1"], params["b1"], params["w2"], params["b2"]
    out_dtype = jnp.bfloat16 if out_dtype is None else out_dtype
    B, T, D = x.shape
    llm_dim = w2.shape[1]

    # Discard trailing frames so seq_len is divisible by k (plain JAX glue).
    T2 = (T // k) * k
    n_tok = T2 // k
    if n_tok == 0:
        # Edge case: fewer frames than the downsample rate -> empty sequence.
        return jnp.zeros((B, 0, llm_dim), dtype=out_dtype)

    x = x[:, :T2, :]
    # (B, T2, D) -> (B, T2//k, D*k) -> (M, D*k)
    x2d = x.reshape(B * n_tok, D * k)

    out2d = _projector_mlp(x2d, w1, b1, w2, b2, out_dtype=out_dtype,
                           force_stream=force_stream, stream_tn=stream_tn)
    return out2d.reshape(B, n_tok, llm_dim)


def init_params(key, encoder_dim, k, llm_dim, hidden=HIDDEN, dtype=jnp.float32):
    """Deterministic synthetic parameter init (PyTorch-Linear-style uniform)."""
    in_dim = encoder_dim * k
    k1, k2, k3, k4 = jax.random.split(key, 4)
    bound1 = 1.0 / jnp.sqrt(in_dim)
    bound2 = 1.0 / jnp.sqrt(hidden)
    # Stored as (in, out), i.e. transposed relative to nn.Linear's (out, in).
    w1 = jax.random.uniform(k1, (in_dim, hidden), dtype, -bound1, bound1)
    b1 = jax.random.uniform(k2, (1, hidden), dtype, -bound1, bound1)
    w2 = jax.random.uniform(k3, (hidden, llm_dim), dtype, -bound2, bound2)
    b2 = jax.random.uniform(k4, (1, llm_dim), dtype, -bound2, bound2)
    return {"w1": w1, "b1": b1, "w2": w2, "b2": b2}


if __name__ == "__main__":
    # Small shapes consistent with the module's forward:
    #   batch=2, seq=18 (not divisible by k to exercise frame discard),
    #   encoder_dim=32, ds_rate k=4  ->  in_dim = 128, llm_dim = 256.
    B, T, D = 2, 18, 32
    K_DS = 4
    LLM_DIM = 256

    key = jax.random.PRNGKey(0)
    kx, kp = jax.random.split(key)
    x = jax.random.normal(kx, (B, T, D), dtype=jnp.float32)
    params = init_params(kp, D, K_DS, LLM_DIM)

    # Pure-JAX f32 reference. Kernel runs matmuls in bf16 with f32 accumulation
    # and stores bf16, so use bf16-appropriate tolerance.
    T2 = T - (T % K_DS)
    xr = x[:, :T2, :].reshape(B, T2 // K_DS, D * K_DS)
    ref = jnp.maximum(xr @ params["w1"] + params["b1"], 0.0) @ params["w2"] + params["b2"]

    # 1) Default (fused, resident-weights) path.
    fwd = jax.jit(functools.partial(encoder_projector_concat, k=K_DS))
    out = jax.block_until_ready(fwd(x, params))
    assert out.shape == (B, T2 // K_DS, LLM_DIM)
    assert jnp.allclose(out.astype(jnp.float32), ref, atol=5e-2, rtol=5e-2), \
        float(jnp.max(jnp.abs(out.astype(jnp.float32) - ref)))

    # 2) W2-streaming fallback path (as used when resident weights exceed the
    #    per-chip VMEM budget, e.g. v7x). Forced here with tn=128 so the grid
    #    has >1 N tile and the hidden-scratch reuse is exercised.
    fwd_s = jax.jit(functools.partial(encoder_projector_concat, k=K_DS,
                                      force_stream=True, stream_tn=128))
    out_s = jax.block_until_ready(fwd_s(x, params))
    assert out_s.shape == (B, T2 // K_DS, LLM_DIM)
    assert jnp.allclose(out_s.astype(jnp.float32), ref, atol=5e-2, rtol=5e-2), \
        float(jnp.max(jnp.abs(out_s.astype(jnp.float32) - ref)))

    print("KERNEL_OK")
</pallas_src>

<mosaic_0001>
module attributes {stable_mosaic.version = 11 : i64} {
  func.func @_mlp_kernel_fused(%arg0: i32, %arg1: memref<8x128xbf16, #tpu.memory_space<vmem>>, %arg2: memref<128x2048xbf16, #tpu.memory_space<vmem>>, %arg3: memref<1x2048xf32, #tpu.memory_space<vmem>>, %arg4: memref<2048x256xbf16, #tpu.memory_space<vmem>>, %arg5: memref<1x256xf32, #tpu.memory_space<vmem>>, %arg6: memref<8x256xbf16, #tpu.memory_space<vmem>>) attributes {dimension_semantics = [#tpu.dimension_semantics<parallel>], iteration_bounds = array<i64: 1>, scalar_prefetch = 0 : i64, scratch_operands = 0 : i64, tpu.core_type = #tpu.core_type<tc>, window_params = [{transform_indices = @transform_0, window_bounds = array<i64: 8, 128>}, {pipeline_mode = #tpu.pipeline_mode<synchronous>, transform_indices = @transform_1, window_bounds = array<i64: 128, 2048>}, {pipeline_mode = #tpu.pipeline_mode<synchronous>, transform_indices = @transform_2, window_bounds = array<i64: 1, 2048>}, {pipeline_mode = #tpu.pipeline_mode<synchronous>, transform_indices = @transform_3, window_bounds = array<i64: 2048, 256>}, {pipeline_mode = #tpu.pipeline_mode<synchronous>, transform_indices = @transform_4, window_bounds = array<i64: 1, 256>}, {transform_indices = @transform_5, window_bounds = array<i64: 8, 256>}]} {
    %c0 = arith.constant 0 : index
    %c0_0 = arith.constant 0 : index
    %0 = vector.load %arg1[%c0, %c0_0] : memref<8x128xbf16, #tpu.memory_space<vmem>>, vector<8x128xbf16>
    %c0_1 = arith.constant 0 : index
    %c0_2 = arith.constant 0 : index
    %1 = vector.load %arg2[%c0_1, %c0_2] : memref<128x2048xbf16, #tpu.memory_space<vmem>>, vector<128x2048xbf16>
    %cst = arith.constant dense<0.000000e+00> : vector<8x2048xf32>
    %2 = tpu.matmul %0, %1, %cst {dimension_numbers = #tpu.dot_dimension_numbers<[1], [0], [0], [1], [0, 0, 1, 1], [], []>} : vector<8x128xbf16>, vector<128x2048xbf16>, vector<8x2048xf32> -> vector<8x2048xf32>
    %c0_3 = arith.constant 0 : index
    %c0_4 = arith.constant 0 : index
    %3 = vector.load %arg3[%c0_3, %c0_4] : memref<1x2048xf32, #tpu.memory_space<vmem>>, vector<1x2048xf32>
    %4 = vector.broadcast %3 : vector<1x2048xf32> to vector<8x2048xf32>
    %5 = arith.addf %2, %4 : vector<8x2048xf32>
    %cst_5 = arith.constant 0.000000e+00 : f32
    %6 = vector.broadcast %cst_5 : f32 to vector<8x2048xf32>
    %7 = arith.maximumf %5, %6 : vector<8x2048xf32>
    %8 = arith.truncf %7 : vector<8x2048xf32> to vector<8x2048xbf16>
    %c0_6 = arith.constant 0 : index
    %c0_7 = arith.constant 0 : index
    %9 = vector.load %arg4[%c0_6, %c0_7] : memref<2048x256xbf16, #tpu.memory_space<vmem>>, vector<2048x256xbf16>
    %cst_8 = arith.constant dense<0.000000e+00> : vector<8x256xf32>
    %10 = tpu.matmul %8, %9, %cst_8 {dimension_numbers = #tpu.dot_dimension_numbers<[1], [0], [0], [1], [0, 0, 1, 1], [], []>} : vector<8x2048xbf16>, vector<2048x256xbf16>, vector<8x256xf32> -> vector<8x256xf32>
    %c0_9 = arith.constant 0 : index
    %c0_10 = arith.constant 0 : index
    %11 = vector.load %arg5[%c0_9, %c0_10] : memref<1x256xf32, #tpu.memory_space<vmem>>, vector<1x256xf32>
    %12 = vector.broadcast %11 : vector<1x256xf32> to vector<8x256xf32>
    %13 = arith.addf %10, %12 : vector<8x256xf32>
    %14 = arith.truncf %13 : vector<8x256xf32> to vector<8x256xbf16>
    %c0_11 = arith.constant 0 : index
    %c0_12 = arith.constant 0 : index
    %15 = vector.load %arg6[%c0_11, %c0_12] : memref<8x256xbf16, #tpu.memory_space<vmem>>, vector<8x256xbf16>
    tpu.vector_store %arg6[%c0_11, %c0_12], %14 {strides = array<i32>} : memref<8x256xbf16, #tpu.memory_space<vmem>>, vector<8x256xbf16>,
    return
  }
  func.func @transform_0(%arg0: i32) -> (i32, i32) {
    %c0_i32 = arith.constant 0 : i32
    %c0_i32_0 = arith.constant 0 : i32
    return %arg0, %c0_i32 : i32, i32
  }
  func.func @transform_1(%arg0: i32) -> (i32, i32) {
    %c0_i32 = arith.constant 0 : i32
    %c0_i32_0 = arith.constant 0 : i32
    %c0_i32_1 = arith.constant 0 : i32
    return %c0_i32, %c0_i32_0 : i32, i32
  }
  func.func @transform_2(%arg0: i32) -> (i32, i32) {
    %c0_i32 = arith.constant 0 : i32
    %c0_i32_0 = arith.constant 0 : i32
    %c0_i32_1 = arith.constant 0 : i32
    return %c0_i32, %c0_i32_0 : i32, i32
  }
  func.func @transform_3(%arg0: i32) -> (i32, i32) {
    %c0_i32 = arith.constant 0 : i32
    %c0_i32_0 = arith.constant 0 : i32
    %c0_i32_1 = arith.constant 0 : i32
    return %c0_i32, %c0_i32_0 : i32, i32
  }
  func.func @transform_4(%arg0: i32) -> (i32, i32) {
    %c0_i32 = arith.constant 0 : i32
    %c0_i32_0 = arith.constant 0 : i32
    %c0_i32_1 = arith.constant 0 : i32
    return %c0_i32, %c0_i32_0 : i32, i32
  }
  func.func @transform_5(%arg0: i32) -> (i32, i32) {
    %c0_i32 = arith.constant 0 : i32
    %c0_i32_0 = arith.constant 0 : i32
    return %arg0, %c0_i32 : i32, i32
  }
}

</mosaic_0001>

<llo_original>
// kernel: encoder_projector_concat.1
$region0: #{encoder_projector_concat.1}
  #allocation0 [shape = 'u32[]', space=smem, size = 0x4, offset = 0x4, fixed_abs, tag = 'smem constant byte address 0x4 - core index']
  #allocation1 [shape = 'u32[144,128]{1,0:T(1,128)}', space=vmem, size = 0x12000, scoped, tag = 'internal scratch']
  %s0 = inlined_call_operand.vmem [shape: bf16[8,128], index: 0, kind: input, shape index: {}]
  %s1 = inlined_call_operand.vmem [shape: bf16[128,2048], index: 1, kind: input, shape index: {}]
  %s2 = inlined_call_operand.vmem [shape: f32[1,2048], index: 2, kind: input, shape index: {}]
  %s3 = inlined_call_operand.vmem [shape: bf16[2048,256], index: 3, kind: input, shape index: {}]
  %s4 = inlined_call_operand.vmem [shape: f32[1,256], index: 4, kind: input, shape index: {}]
  %s5 = inlined_call_operand.vmem [shape: bf16[8,256], index: 5, kind: output, shape index: {}]
  %s6 = sld [smem:[#allocation0]]
  $region30: #{encoder_projector_concat.1} parent=0
    _
  %s8 = ssub.s32 1, %s6
  %s9 = scalar_select 0, %s8, %s6
  // Predicated region
  $region2: #{encoder_projector_concat.1} parent=0 // pred_check
    _
  $region3: #{encoder_projector_concat.1} parent=0 // pred_check_branch
    %11 = sbr.rel (0) target = $region5
  $region4: #{encoder_projector_concat.1} parent=0 // pred_region
    _
  $region5: #{encoder_projector_concat.1} parent=0 // pred_fallthru
    _
  // Predicated region
  $region6: #{encoder_projector_concat.1} parent=0 // pred_check
    _
  $region7: #{encoder_projector_concat.1} parent=0 // pred_check_branch
    %13 = sbr.rel (0) target = $region9
  $region8: #{encoder_projector_concat.1} parent=0 // pred_region
    _
  $region9: #{encoder_projector_concat.1} parent=0 // pred_fallthru
    _
  // Predicated region
  $region10: #{encoder_projector_concat.1} parent=0 // pred_check
    _
  $region11: #{encoder_projector_concat.1} parent=0 // pred_check_branch
    %15 = sbr.rel (0) target = $region13
  $region12: #{encoder_projector_concat.1} parent=0 // pred_region
    _
  $region13: #{encoder_projector_concat.1} parent=0 // pred_fallthru
    _
  // Predicated region
  $region14: #{encoder_projector_concat.1} parent=0 // pred_check
    _
  $region15: #{encoder_projector_concat.1} parent=0 // pred_check_branch
    %17 = sbr.rel (0) target = $region17
  $region16: #{encoder_projector_concat.1} parent=0 // pred_region
    _
  $region17: #{encoder_projector_concat.1} parent=0 // pred_fallthru
    _
  // Predicated region
  $region18: #{encoder_projector_concat.1} parent=0 // pred_check
    _
  $region19: #{encoder_projector_concat.1} parent=0 // pred_check_branch
    %19 = sbr.rel (0) target = $region21
  $region20: #{encoder_projector_concat.1} parent=0 // pred_region
    _
  $region21: #{encoder_projector_concat.1} parent=0 // pred_fallthru
    _
  %v21 = vld [vmem:[%s0] sm:$0xf]
  %v22 = vld [vmem:[%s1] sm:$0xff]
  %v23 = vld [vmem:[%s1 + $0x8] sm:$0xff]
  %v24 = vld [vmem:[%s1 + $0x10] sm:$0xff]
  %v25 = vld [vmem:[%s1 + $0x18] sm:$0xff]
  %v26 = vld [vmem:[%s1 + $0x20] sm:$0xff]
  %v27 = vld [vmem:[%s1 + $0x28] sm:$0xff]
  %v28 = vld [vmem:[%s1 + $0x30] sm:$0xff]
  %v29 = vld [vmem:[%s1 + $0x38] sm:$0xff]
  %v30 = vld [vmem:[%s1 + $0x40] sm:$0xff]
  %v31 = vld [vmem:[%s1 + $0x48] sm:$0xff]
  %v32 = vld [vmem:[%s1 + $0x50] sm:$0xff]
  %v33 = vld [vmem:[%s1 + $0x58] sm:$0xff]
  %v34 = vld [vmem:[%s1 + $0x60] sm:$0xff]
  %v35 = vld [vmem:[%s1 + $0x68] sm:$0xff]
  %v36 = vld [vmem:[%s1 + $0x70] sm:$0xff]
  %v37 = vld [vmem:[%s1 + $0x78] sm:$0xff]
  %v38 = vld [vmem:[%s1 + $0x80] sm:$0xff]
  %v39 = vld [vmem:[%s1 + $0x88] sm:$0xff]
  %v40 = vld [vmem:[%s1 + $0x90] sm:$0xff]
  %v41 = vld [vmem:[%s1 + $0x98] sm:$0xff]
  %v42 = vld [vmem:[%s1 + $0xa0] sm:$0xff]
  %v43 = vld [vmem:[%s1 + $0xa8] sm:$0xff]
  %v44 = vld [vmem:[%s1 + $0xb0] sm:$0xff]
  %v45 = vld [vmem:[%s1 + $0xb8] sm:$0xff]
  %v46 = vld [vmem:[%s1 + $0xc0] sm:$0xff]
  %v47 = vld [vmem:[%s1 + $0xc8] sm:$0xff]
  %v48 = vld [vmem:[%s1 + $0xd0] sm:$0xff]
  %v49 = vld [vmem:[%s1 + $0xd8] sm:$0xff]
  %v50 = vld [vmem:[%s1 + $0xe0] sm:$0xff]
  %v51 = vld [vmem:[%s1 + $0xe8] sm:$0xff]
  %v52 = vld [vmem:[%s1 + $0xf0] sm:$0xff]
  %v53 = vld [vmem:[%s1 + $0xf8] sm:$0xff]
  %v54 = vld [vmem:[%s1 + $0x100] sm:$0xff]
  %v55 = vld [vmem:[%s1 + $0x108] sm:$0xff]
  %v56 = vld [vmem:[%s1 + $0x110] sm:$0xff]
  %v57 = vld [vmem:[%s1 + $0x118] sm:$0xff]
  %v58 = vld [vmem:[%s1 + $0x120] sm:$0xff]
  %v59 = vld [vmem:[%s1 + $0x128] sm:$0xff]
  %v60 = vld [vmem:[%s1 + $0x130] sm:$0xff]
  %v61 = vld [vmem:[%s1 + $0x138] sm:$0xff]
  %v62 = vld [vmem:[%s1 + $0x140] sm:$0xff]
  %v63 = vld [vmem:[%s1 + $0x148] sm:$0xff]
  %v64 = vld [vmem:[%s1 + $0x150] sm:$0xff]
  %v65 = vld [vmem:[%s1 + $0x158] sm:$0xff]
  %v66 = vld [vmem:[%s1 + $0x160] sm:$0xff]
  %v67 = vld [vmem:[%s1 + $0x168] sm:$0xff]
  %v68 = vld [vmem:[%s1 + $0x170] sm:$0xff]
  %v69 = vld [vmem:[%s1 + $0x178] sm:$0xff]
  %v70 = vld [vmem:[%s1 + $0x180] sm:$0xff]
  %v71 = vld [vmem:[%s1 + $0x188] sm:$0xff]
  %v72 = vld [vmem:[%s1 + $0x190] sm:$0xff]
  %v73 = vld [vmem:[%s1 + $0x198] sm:$0xff]
  %v74 = vld [vmem:[%s1 + $0x1a0] sm:$0xff]
  %v75 = vld [vmem:[%s1 + $0x1a8] sm:$0xff]
  %v76 = vld [vmem:[%s1 + $0x1b0] sm:$0xff]
  %v77 = vld [vmem:[%s1 + $0x1b8] sm:$0xff]
  %v78 = vld [vmem:[%s1 + $0x1c0] sm:$0xff]
  %v79 = vld [vmem:[%s1 + $0x1c8] sm:$0xff]
  %v80 = vld [vmem:[%s1 + $0x1d0] sm:$0xff]
  %v81 = vld [vmem:[%s1 + $0x1d8] sm:$0xff]
  %v82 = vld [vmem:[%s1 + $0x1e0] sm:$0xff]
  %v83 = vld [vmem:[%s1 + $0x1e8] sm:$0xff]
  %v84 = vld [vmem:[%s1 + $0x1f0] sm:$0xff]
  %v85 = vld [vmem:[%s1 + $0x1f8] sm:$0xff]
  %v86 = vld [vmem:[%s1 + $0x200] sm:$0xff]
  %v87 = vld [vmem:[%s1 + $0x208] sm:$0xff]
  %v88 = vld [vmem:[%s1 + $0x210] sm:$0xff]
  %v89 = vld [vmem:[%s1 + $0x218] sm:$0xff]
  %v90 = vld [vmem:[%s1 + $0x220] sm:$0xff]
  %v91 = vld [vmem:[%s1 + $0x228] sm:$0xff]
  %v92 = vld [vmem:[%s1 + $0x230] sm:$0xff]
  %v93 = vld [vmem:[%s1 + $0x238] sm:$0xff]
  %v94 = vld [vmem:[%s1 + $0x240] sm:$0xff]
  %v95 = vld [vmem:[%s1 + $0x248] sm:$0xff]
  %v96 = vld [vmem:[%s1 + $0x250] sm:$0xff]
  %v97 = vld [vmem:[%s1 + $0x258] sm:$0xff]
  %v98 = vld [vmem:[%s1 + $0x260] sm:$0xff]
  %v99 = vld [vmem:[%s1 + $0x268] sm:$0xff]
  %v100 = vld [vmem:[%s1 + $0x270] sm:$0xff]
  %v101 = vld [vmem:[%s1 + $0x278] sm:$0xff]
  %v102 = vld [vmem:[%s1 + $0x280] sm:$0xff]
  %v103 = vld [vmem:[%s1 + $0x288] sm:$0xff]
  %v104 = vld [vmem:[%s1 + $0x290] sm:$0xff]
  %v105 = vld [vmem:[%s1 + $0x298] sm:$0xff]
  %v106 = vld [vmem:[%s1 + $0x2a0] sm:$0xff]
  %v107 = vld [vmem:[%s1 + $0x2a8] sm:$0xff]
  %v108 = vld [vmem:[%s1 + $0x2b0] sm:$0xff]
  %v109 = vld [vmem:[%s1 + $0x2b8] sm:$0xff]
  %v110 = vld [vmem:[%s1 + $0x2c0] sm:$0xff]
  %v111 = vld [vmem:[%s1 + $0x2c8] sm:$0xff]
  %v112 = vld [vmem:[%s1 + $0x2d0] sm:$0xff]
  %v113 = vld [vmem:[%s1 + $0x2d8] sm:$0xff]
  %v114 = vld [vmem:[%s1 + $0x2e0] sm:$0xff]
  %v115 = vld [vmem:[%s1 + $0x2e8] sm:$0xff]
  %v116 = vld [vmem:[%s1 + $0x2f0] sm:$0xff]
  %v117 = vld [vmem:[%s1 + $0x2f8] sm:$0xff]
  %v118 = vld [vmem:[%s1 + $0x300] sm:$0xff]
  %v119 = vld [vmem:[%s1 + $0x308] sm:$0xff]
  %v120 = vld [vmem:[%s1 + $0x310] sm:$0xff]
  %v121 = vld [vmem:[%s1 + $0x318] sm:$0xff]
  %v122 = vld [vmem:[%s1 + $0x320] sm:$0xff]
  %v123 = vld [vmem:[%s1 + $0x328] sm:$0xff]
  %v124 = vld [vmem:[%s1 + $0x330] sm:$0xff]
  %v125 = vld [vmem:[%s1 + $0x338] sm:$0xff]
  %v126 = vld [vmem:[%s1 + $0x340] sm:$0xff]
  %v127 = vld [vmem:[%s1 + $0x348] sm:$0xff]
  %v128 = vld [vmem:[%s1 + $0x350] sm:$0xff]
  %v129 = vld [vmem:[%s1 + $0x358] sm:$0xff]
  %v130 = vld [vmem:[%s1 + $0x360] sm:$0xff]
  %v131 = vld [vmem:[%s1 + $0x368] sm:$0xff]
  %v132 = vld [vmem:[%s1 + $0x370] sm:$0xff]
  %v133 = vld [vmem:[%s1 + $0x378] sm:$0xff]
  %v134 = vld [vmem:[%s1 + $0x380] sm:$0xff]
  %v135 = vld [vmem:[%s1 + $0x388] sm:$0xff]
  %v136 = vld [vmem:[%s1 + $0x390] sm:$0xff]
  %v137 = vld [vmem:[%s1 + $0x398] sm:$0xff]
  %v138 = vld [vmem:[%s1 + $0x3a0] sm:$0xff]
  %v139 = vld [vmem:[%s1 + $0x3a8] sm:$0xff]
  %v140 = vld [vmem:[%s1 + $0x3b0] sm:$0xff]
  %v141 = vld [vmem:[%s1 + $0x3b8] sm:$0xff]
  %v142 = vld [vmem:[%s1 + $0x3c0] sm:$0xff]
  %v143 = vld [vmem:[%s1 + $0x3c8] sm:$0xff]
  %v144 = vld [vmem:[%s1 + $0x3d0] sm:$0xff]
  %v145 = vld [vmem:[%s1 + $0x3d8] sm:$0xff]
  %v146 = vld [vmem:[%s1 + $0x3e0] sm:$0xff]
  %v147 = vld [vmem:[%s1 + $0x3e8] sm:$0xff]
  %v148 = vld [vmem:[%s1 + $0x3f0] sm:$0xff]
  %v149 = vld [vmem:[%s1 + $0x3f8] sm:$0xff]
  %v150 = vld [vmem:[%s2] sm:$0xff]
  %v151 = vld [vmem:[%s2 + $0x8] sm:$0xff]
  %v154 = vlaneseq
  %v155 = vshrl.u32 %v154, 7
  %v156 = vsub.s32 0, %v155
  %v157 = vrot.slane %v150, %v156
  %v158 = vlaneseq
  %v159 = vshrl.u32 %v158, 7
  %v160 = vsub.s32 1, %v159
  %v161 = vrot.slane %v150, %v160
  %v162 = vlaneseq
  %v163 = vshrl.u32 %v162, 7
  %v164 = vsub.s32 2, %v163
  %v165 = vrot.slane %v150, %v164
  %v166 = vlaneseq
  %v167 = vshrl.u32 %v166, 7
  %v168 = vsub.s32 3, %v167
  %v169 = vrot.slane %v150, %v168
  %v170 = vlaneseq
  %v171 = vshrl.u32 %v170, 7
  %v172 = vsub.s32 4, %v171
  %v173 = vrot.slane %v150, %v172
  %v174 = vlaneseq
  %v175 = vshrl.u32 %v174, 7
  %v176 = vsub.s32 5, %v175
  %v177 = vrot.slane %v150, %v176
  %v178 = vlaneseq
  %v179 = vshrl.u32 %v178, 7
  %v180 = vsub.s32 6, %v179
  %v181 = vrot.slane %v150, %v180
  %v182 = vlaneseq
  %v183 = vshrl.u32 %v182, 7
  %v184 = vsub.s32 7, %v183
  %v185 = vrot.slane %v150, %v184
  %v186 = vlaneseq
  %v187 = vshrl.u32 %v186, 7
  %v188 = vsub.s32 0, %v187
  %v189 = vrot.slane %v151, %v188
  %v190 = vlaneseq
  %v191 = vshrl.u32 %v190, 7
  %v192 = vsub.s32 1, %v191
  %v193 = vrot.slane %v151, %v192
  %v194 = vlaneseq
  %v195 = vshrl.u32 %v194, 7
  %v196 = vsub.s32 2, %v195
  %v197 = vrot.slane %v151, %v196
  %v198 = vlaneseq
  %v199 = vshrl.u32 %v198, 7
  %v200 = vsub.s32 3, %v199
  %v201 = vrot.slane %v151, %v200
  %v202 = vlaneseq
  %v203 = vshrl.u32 %v202, 7
  %v204 = vsub.s32 4, %v203
  %v205 = vrot.slane %v151, %v204
  %v206 = vlaneseq
  %v207 = vshrl.u32 %v206, 7
  %v208 = vsub.s32 5, %v207
  %v209 = vrot.slane %v151, %v208
  %v210 = vlaneseq
  %v211 = vshrl.u32 %v210, 7
  %v212 = vsub.s32 6, %v211
  %v213 = vrot.slane %v151, %v212
  %v214 = vlaneseq
  %v215 = vshrl.u32 %v214, 7
  %v216 = vsub.s32 7, %v215
  %v217 = vrot.slane %v151, %v216
  %v362 = vunpack.c.l.b16 %v22
  %v363 = vunpack.c.h.b16 %v22
  %v364 = vunpack.c.l.b16 %v23
  %v365 = vunpack.c.h.b16 %v23
  %v366 = vunpack.c.l.b16 %v24
  %v367 = vunpack.c.h.b16 %v24
  %v368 = vunpack.c.l.b16 %v25
  %v369 = vunpack.c.h.b16 %v25
  %v370 = vunpack.c.l.b16 %v26
  %v371 = vunpack.c.h.b16 %v26
  %v372 = vunpack.c.l.b16 %v27
  %v373 = vunpack.c.h.b16 %v27
  %v374 = vunpack.c.l.b16 %v28
  %v375 = vunpack.c.h.b16 %v28
  %v376 = vunpack.c.l.b16 %v29
  %v377 = vunpack.c.h.b16 %v29
  %v378 = vunpack.c.l.b16 %v30
  %v379 = vunpack.c.h.b16 %v30
  %v380 = vunpack.c.l.b16 %v31
  %v381 = vunpack.c.h.b16 %v31
  %v382 = vunpack.c.l.b16 %v32
  %v383 = vunpack.c.h.b16 %v32
  %v384 = vunpack.c.l.b16 %v33
  %v385 = vunpack.c.h.b16 %v33
  %v386 = vunpack.c.l.b16 %v34
  %v387 = vunpack.c.h.b16 %v34
  %v388 = vunpack.c.l.b16 %v35
  %v389 = vunpack.c.h.b16 %v35
  %v390 = vunpack.c.l.b16 %v36
  %v391 = vunpack.c.h.b16 %v36
  %v392 = vunpack.c.l.b16 %v37
  %v393 = vunpack.c.h.b16 %v37
  %v394 = vunpack.c.l.b16 %v38
  %v395 = vunpack.c.h.b16 %v38
  %v396 = vunpack.c.l.b16 %v39
  %v397 = vunpack.c.h.b16 %v39
  %v398 = vunpack.c.l.b16 %v40
  %v399 = vunpack.c.h.b16 %v40
  %v400 = vunpack.c.l.b16 %v41
  %v401 = vunpack.c.h.b16 %v41
  %v402 = vunpack.c.l.b16 %v42
  %v403 = vunpack.c.h.b16 %v42
  %v404 = vunpack.c.l.b16 %v43
  %v405 = vunpack.c.h.b16 %v43
  %v406 = vunpack.c.l.b16 %v44
  %v407 = vunpack.c.h.b16 %v44
  %v408 = vunpack.c.l.b16 %v45
  %v409 = vunpack.c.h.b16 %v45
  %v410 = vunpack.c.l.b16 %v46
  %v411 = vunpack.c.h.b16 %v46
  %v412 = vunpack.c.l.b16 %v47
  %v413 = vunpack.c.h.b16 %v47
  %v414 = vunpack.c.l.b16 %v48
  %v415 = vunpack.c.h.b16 %v48
  %v416 = vunpack.c.l.b16 %v49
  %v417 = vunpack.c.h.b16 %v49
  %v418 = vunpack.c.l.b16 %v50
  %v419 = vunpack.c.h.b16 %v50
  %v420 = vunpack.c.l.b16 %v51
  %v421 = vunpack.c.h.b16 %v51
  %v422 = vunpack.c.l.b16 %v52
  %v423 = vunpack.c.h.b16 %v52
  %v424 = vunpack.c.l.b16 %v53
  %v425 = vunpack.c.h.b16 %v53
  %v426 = vunpack.c.l.b16 %v54
  %v427 = vunpack.c.h.b16 %v54
  %v428 = vunpack.c.l.b16 %v55
  %v429 = vunpack.c.h.b16 %v55
  %v430 = vunpack.c.l.b16 %v56
  %v431 = vunpack.c.h.b16 %v56
  %v432 = vunpack.c.l.b16 %v57
  %v433 = vunpack.c.h.b16 %v57
  %v434 = vunpack.c.l.b16 %v58
  %v435 = vunpack.c.h.b16 %v58
  %v436 = vunpack.c.l.b16 %v59
  %v437 = vunpack.c.h.b16 %v59
  %v438 = vunpack.c.l.b16 %v60
  %v439 = vunpack.c.h.b16 %v60
  %v440 = vunpack.c.l.b16 %v61
  %v441 = vunpack.c.h.b16 %v61
  %v442 = vunpack.c.l.b16 %v62
  %v443 = vunpack.c.h.b16 %v62
  %v444 = vunpack.c.l.b16 %v63
  %v445 = vunpack.c.h.b16 %v63
  %v446 = vunpack.c.l.b16 %v64
  %v447 = vunpack.c.h.b16 %v64
  %v448 = vunpack.c.l.b16 %v65
  %v449 = vunpack.c.h.b16 %v65
  %v450 = vunpack.c.l.b16 %v66
  %v451 = vunpack.c.h.b16 %v66
  %v452 = vunpack.c.l.b16 %v67
  %v453 = vunpack.c.h.b16 %v67
  %v454 = vunpack.c.l.b16 %v68
  %v455 = vunpack.c.h.b16 %v68
  %v456 = vunpack.c.l.b16 %v69
  %v457 = vunpack.c.h.b16 %v69
  %v458 = vunpack.c.l.b16 %v70
  %v459 = vunpack.c.h.b16 %v70
  %v460 = vunpack.c.l.b16 %v71
  %v461 = vunpack.c.h.b16 %v71
  %v462 = vunpack.c.l.b16 %v72
  %v463 = vunpack.c.h.b16 %v72
  %v464 = vunpack.c.l.b16 %v73
  %v465 = vunpack.c.h.b16 %v73
  %v466 = vunpack.c.l.b16 %v74
  %v467 = vunpack.c.h.b16 %v74
  %v468 = vunpack.c.l.b16 %v75
  %v469 = vunpack.c.h.b16 %v75
  %v470 = vunpack.c.l.b16 %v76
  %v471 = vunpack.c.h.b16 %v76
  %v472 = vunpack.c.l.b16 %v77
  %v473 = vunpack.c.h.b16 %v77
  %v474 = vunpack.c.l.b16 %v78
  %v475 = vunpack.c.h.b16 %v78
  %v476 = vunpack.c.l.b16 %v79
  %v477 = vunpack.c.h.b16 %v79
  %v478 = vunpack.c.l.b16 %v80
  %v479 = vunpack.c.h.b16 %v80
  %v480 = vunpack.c.l.b16 %v81
  %v481 = vunpack.c.h.b16 %v81
  %v482 = vunpack.c.l.b16 %v82
  %v483 = vunpack.c.h.b16 %v82
  %v484 = vunpack.c.l.b16 %v83
  %v485 = vunpack.c.h.b16 %v83
  %v486 = vunpack.c.l.b16 %v84
  %v487 = vunpack.c.h.b16 %v84
  %v488 = vunpack.c.l.b16 %v85
  %v489 = vunpack.c.h.b16 %v85
  %v490 = vunpack.c.l.b16 %v86
  %v491 = vunpack.c.h.b16 %v86
  %v492 = vunpack.c.l.b16 %v87
  %v493 = vunpack.c.h.b16 %v87
  %v494 = vunpack.c.l.b16 %v88
  %v495 = vunpack.c.h.b16 %v88
  %v496 = vunpack.c.l.b16 %v89
  %v497 = vunpack.c.h.b16 %v89
  %v498 = vunpack.c.l.b16 %v90
  %v499 = vunpack.c.h.b16 %v90
  %v500 = vunpack.c.l.b16 %v91
  %v501 = vunpack.c.h.b16 %v91
  %v502 = vunpack.c.l.b16 %v92
  %v503 = vunpack.c.h.b16 %v92
  %v504 = vunpack.c.l.b16 %v93
  %v505 = vunpack.c.h.b16 %v93
  %v506 = vunpack.c.l.b16 %v94
  %v507 = vunpack.c.h.b16 %v94
  %v508 = vunpack.c.l.b16 %v95
  %v509 = vunpack.c.h.b16 %v95
  %v510 = vunpack.c.l.b16 %v96
  %v511 = vunpack.c.h.b16 %v96
  %v512 = vunpack.c.l.b16 %v97
  %v513 = vunpack.c.h.b16 %v97
  %v514 = vunpack.c.l.b16 %v98
  %v515 = vunpack.c.h.b16 %v98
  %v516 = vunpack.c.l.b16 %v99
  %v517 = vunpack.c.h.b16 %v99
  %v518 = vunpack.c.l.b16 %v100
  %v519 = vunpack.c.h.b16 %v100
  %v520 = vunpack.c.l.b16 %v101
  %v521 = vunpack.c.h.b16 %v101
  %v522 = vunpack.c.l.b16 %v102
  %v523 = vunpack.c.h.b16 %v102
  %v524 = vunpack.c.l.b16 %v103
  %v525 = vunpack.c.h.b16 %v103
  %v526 = vunpack.c.l.b16 %v104
  %v527 = vunpack.c.h.b16 %v104
  %v528 = vunpack.c.l.b16 %v105
  %v529 = vunpack.c.h.b16 %v105
  %v530 = vunpack.c.l.b16 %v106
  %v531 = vunpack.c.h.b16 %v106
  %v532 = vunpack.c.l.b16 %v107
  %v533 = vunpack.c.h.b16 %v107
  %v534 = vunpack.c.l.b16 %v108
  %v535 = vunpack.c.h.b16 %v108
  %v536 = vunpack.c.l.b16 %v109
  %v537 = vunpack.c.h.b16 %v109
  %v538 = vunpack.c.l.b16 %v110
  %v539 = vunpack.c.h.b16 %v110
  %v540 = vunpack.c.l.b16 %v111
  %v541 = vunpack.c.h.b16 %v111
  %v542 = vunpack.c.l.b16 %v112
  %v543 = vunpack.c.h.b16 %v112
  %v544 = vunpack.c.l.b16 %v113
  %v545 = vunpack.c.h.b16 %v113
  %v546 = vunpack.c.l.b16 %v114
  %v547 = vunpack.c.h.b16 %v114
  %v548 = vunpack.c.l.b16 %v115
  %v549 = vunpack.c.h.b16 %v115
  %v550 = vunpack.c.l.b16 %v116
  %v551 = vunpack.c.h.b16 %v116
  %v552 = vunpack.c.l.b16 %v117
  %v553 = vunpack.c.h.b16 %v117
  %v554 = vunpack.c.l.b16 %v118
  %v555 = vunpack.c.h.b16 %v118
  %v556 = vunpack.c.l.b16 %v119
  %v557 = vunpack.c.h.b16 %v119
  %v558 = vunpack.c.l.b16 %v120
  %v559 = vunpack.c.h.b16 %v120
  %v560 = vunpack.c.l.b16 %v121
  %v561 = vunpack.c.h.b16 %v121
  %v562 = vunpack.c.l.b16 %v122
  %v563 = vunpack.c.h.b16 %v122
  %v564 = vunpack.c.l.b16 %v123
  %v565 = vunpack.c.h.b16 %v123
  %v566 = vunpack.c.l.b16 %v124
  %v567 = vunpack.c.h.b16 %v124
  %v568 = vunpack.c.l.b16 %v125
  %v569 = vunpack.c.h.b16 %v125
  %v570 = vunpack.c.l.b16 %v126
  %v571 = vunpack.c.h.b16 %v126
  %v572 = vunpack.c.l.b16 %v127
  %v573 = vunpack.c.h.b16 %v127
  %v574 = vunpack.c.l.b16 %v128
  %v575 = vunpack.c.h.b16 %v128
  %v576 = vunpack.c.l.b16 %v129
  %v577 = vunpack.c.h.b16 %v129
  %v578 = vunpack.c.l.b16 %v130
  %v579 = vunpack.c.h.b16 %v130
  %v580 = vunpack.c.l.b16 %v131
  %v581 = vunpack.c.h.b16 %v131
  %v582 = vunpack.c.l.b16 %v132
  %v583 = vunpack.c.h.b16 %v132
  %v584 = vunpack.c.l.b16 %v133
  %v585 = vunpack.c.h.b16 %v133
  %v586 = vunpack.c.l.b16 %v134
  %v587 = vunpack.c.h.b16 %v134
  %v588 = vunpack.c.l.b16 %v135
  %v589 = vunpack.c.h.b16 %v135
  %v590 = vunpack.c.l.b16 %v136
  %v591 = vunpack.c.h.b16 %v136
  %v592 = vunpack.c.l.b16 %v137
  %v593 = vunpack.c.h.b16 %v137
  %v594 = vunpack.c.l.b16 %v138
  %v595 = vunpack.c.h.b16 %v138
  %v596 = vunpack.c.l.b16 %v139
  %v597 = vunpack.c.h.b16 %v139
  %v598 = vunpack.c.l.b16 %v140
  %v599 = vunpack.c.h.b16 %v140
  %v600 = vunpack.c.l.b16 %v141
  %v601 = vunpack.c.h.b16 %v141
  %v602 = vunpack.c.l.b16 %v142
  %v603 = vunpack.c.h.b16 %v142
  %v604 = vunpack.c.l.b16 %v143
  %v605 = vunpack.c.h.b16 %v143
  %v606 = vunpack.c.l.b16 %v144
  %v607 = vunpack.c.h.b16 %v144
  %v608 = vunpack.c.l.b16 %v145
  %v609 = vunpack.c.h.b16 %v145
  %v610 = vunpack.c.l.b16 %v146
  %v611 = vunpack.c.h.b16 %v146
  %v612 = vunpack.c.l.b16 %v147
  %v613 = vunpack.c.h.b16 %v147
  %v614 = vunpack.c.l.b16 %v148
  %v615 = vunpack.c.h.b16 %v148
  %v616 = vunpack.c.l.b16 %v149
  %v617 = vunpack.c.h.b16 %v149
  %v618 = vpack.c.b16 %v378, %v362
  %v619 = vpack.c.b16 %v379, %v363
  %v620 = vpack.c.b16 %v380, %v364
  %v621 = vpack.c.b16 %v381, %v365
  %v622 = vpack.c.b16 %v382, %v366
  %v623 = vpack.c.b16 %v383, %v367
  %v624 = vpack.c.b16 %v384, %v368
  %v625 = vpack.c.b16 %v385, %v369
  %v626 = vpack.c.b16 %v386, %v370
  %v627 = vpack.c.b16 %v387, %v371
  %v628 = vpack.c.b16 %v388, %v372
  %v629 = vpack.c.b16 %v389, %v373
  %v630 = vpack.c.b16 %v390, %v374
  %v631 = vpack.c.b16 %v391, %v375
  %v632 = vpack.c.b16 %v392, %v376
  %v633 = vpack.c.b16 %v393, %v377
  %v634 = vpack.c.b16 %v410, %v394
  %v635 = vpack.c.b16 %v411, %v395
  %v636 = vpack.c.b16 %v412, %v396
  %v637 = vpack.c.b16 %v413, %v397
  %v638 = vpack.c.b16 %v414, %v398
  %v639 = vpack.c.b16 %v415, %v399
  %v640 = vpack.c.b16 %v416, %v400
  %v641 = vpack.c.b16 %v417, %v401
  %v642 = vpack.c.b16 %v418, %v402
  %v643 = vpack.c.b16 %v419, %v403
  %v644 = vpack.c.b16 %v420, %v404
  %v645 = vpack.c.b16 %v421, %v405
  %v646 = vpack.c.b16 %v422, %v406
  %v647 = vpack.c.b16 %v423, %v407
  %v648 = vpack.c.b16 %v424, %v408
  %v649 = vpack.c.b16 %v425, %v409
  %v650 = vpack.c.b16 %v442, %v426
  %v651 = vpack.c.b16 %v443, %v427
  %v652 = vpack.c.b16 %v444, %v428
  %v653 = vpack.c.b16 %v445, %v429
  %v654 = vpack.c.b16 %v446, %v430
  %v655 = vpack.c.b16 %v447, %v431
  %v656 = vpack.c.b16 %v448, %v432
  %v657 = vpack.c.b16 %v449, %v433
  %v658 = vpack.c.b16 %v450, %v434
  %v659 = vpack.c.b16 %v451, %v435
  %v660 = vpack.c.b16 %v452, %v436
  %v661 = vpack.c.b16 %v453, %v437
  %v662 = vpack.c.b16 %v454, %v438
  %v663 = vpack.c.b16 %v455, %v439
  %v664 = vpack.c.b16 %v456, %v440
  %v665 = vpack.c.b16 %v457, %v441
  %v666 = vpack.c.b16 %v474, %v458
  %v667 = vpack.c.b16 %v475, %v459
  %v668 = vpack.c.b16 %v476, %v460
  %v669 = vpack.c.b16 %v477, %v461
  %v670 = vpack.c.b16 %v478, %v462
  %v671 = vpack.c.b16 %v479, %v463
  %v672 = vpack.c.b16 %v480, %v464
  %v673 = vpack.c.b16 %v481, %v465
  %v674 = vpack.c.b16 %v482, %v466
  %v675 = vpack.c.b16 %v483, %v467
  %v676 = vpack.c.b16 %v484, %v468
  %v677 = vpack.c.b16 %v485, %v469
  %v678 = vpack.c.b16 %v486, %v470
  %v679 = vpack.c.b16 %v487, %v471
  %v680 = vpack.c.b16 %v488, %v472
  %v681 = vpack.c.b16 %v489, %v473
  %v682 = vpack.c.b16 %v506, %v490
  %v683 = vpack.c.b16 %v507, %v491
  %v684 = vpack.c.b16 %v508, %v492
  %v685 = vpack.c.b16 %v509, %v493
  %v686 = vpack.c.b16 %v510, %v494
  %v687 = vpack.c.b16 %v511, %v495
  %v688 = vpack.c.b16 %v512, %v496
  %v689 = vpack.c.b16 %v513, %v497
  %v690 = vpack.c.b16 %v514, %v498
  %v691 = vpack.c.b16 %v515, %v499
  %v692 = vpack.c.b16 %v516, %v500
  %v693 = vpack.c.b16 %v517, %v501
  %v694 = vpack.c.b16 %v518, %v502
  %v695 = vpack.c.b16 %v519, %v503
  %v696 = vpack.c.b16 %v520, %v504
  %v697 = vpack.c.b16 %v521, %v505
  %v698 = vpack.c.b16 %v538, %v522
  %v699 = vpack.c.b16 %v539, %v523
  %v700 = vpack.c.b16 %v540, %v524
  %v701 = vpack.c.b16 %v541, %v525
  %v702 = vpack.c.b16 %v542, %v526
  %v703 = vpack.c.b16 %v543, %v527
  %v704 = vpack.c.b16 %v544, %v528
  %v705 = vpack.c.b16 %v545, %v529
  %v706 = vpack.c.b16 %v546, %v530
  %v707 = vpack.c.b16 %v547, %v531
  %v708 = vpack.c.b16 %v548, %v532
  %v709 = vpack.c.b16 %v549, %v533
  %v710 = vpack.c.b16 %v550, %v534
  %v711 = vpack.c.b16 %v551, %v535
  %v712 = vpack.c.b16 %v552, %v536
  %v713 = vpack.c.b16 %v553, %v537
  %v714 = vpack.c.b16 %v570, %v554
  %v715 = vpack.c.b16 %v571, %v555
  %v716 = vpack.c.b16 %v572, %v556
  %v717 = vpack.c.b16 %v573, %v557
  %v718 = vpack.c.b16 %v574, %v558
  %v719 = vpack.c.b16 %v575, %v559
  %v720 = vpack.c.b16 %v576, %v560
  %v721 = vpack.c.b16 %v577, %v561
  %v722 = vpack.c.b16 %v578, %v562
  %v723 = vpack.c.b16 %v579, %v563
  %v724 = vpack.c.b16 %v580, %v564
  %v725 = vpack.c.b16 %v581, %v565
  %v726 = vpack.c.b16 %v582, %v566
  %v727 = vpack.c.b16 %v583, %v567
  %v728 = vpack.c.b16 %v584, %v568
  %v729 = vpack.c.b16 %v585, %v569
  %v730 = vpack.c.b16 %v602, %v586
  %v731 = vpack.c.b16 %v603, %v587
  %v732 = vpack.c.b16 %v604, %v588
  %v733 = vpack.c.b16 %v605, %v589
  %v734 = vpack.c.b16 %v606, %v590
  %v735 = vpack.c.b16 %v607, %v591
  %v736 = vpack.c.b16 %v608, %v592
  %v737 = vpack.c.b16 %v609, %v593
  %v738 = vpack.c.b16 %v610, %v594
  %v739 = vpack.c.b16 %v611, %v595
  %v740 = vpack.c.b16 %v612, %v596
  %v741 = vpack.c.b16 %v613, %v597
  %v742 = vpack.c.b16 %v614, %v598
  %v743 = vpack.c.b16 %v615, %v599
  %v744 = vpack.c.b16 %v616, %v600
  %v745 = vpack.c.b16 %v617, %v601
  %874 = vmatprep.subr.bf16.mxu0 %v619
  %875 = vmatpush1.bf16.msra.mxu0 %v618
  %876 = vmatprep.subr.bf16.mxu0 %v635
  %877 = vmatpush1.bf16.msra.mxu0 %v634
  %878 = vmatprep.subr.bf16.mxu0 %v651
  %879 = vmatpush1.bf16.msra.mxu0 %v650
  %880 = vmatprep.subr.bf16.mxu0 %v667
  %881 = vmatpush1.bf16.msra.mxu0 %v666
  %882 = vmatprep.subr.bf16.mxu0 %v683
  %883 = vmatpush1.bf16.msra.mxu0 %v682
  %884 = vmatprep.subr.bf16.mxu0 %v699
  %885 = vmatpush1.bf16.msra.mxu0 %v698
  %886 = vmatprep.subr.bf16.mxu0 %v715
  %887 = vmatpush1.bf16.msra.mxu0 %v714
  %888 = vmatprep.subr.bf16.mxu0 %v731
  %889 = vmatpush1.bf16.msra.mxu0 %v730
  %890 = vmatprep.subr.bf16.mxu0 0
  %891 = vmatpush1.bf16.msra.mxu0 0
  %892 = vmatprep.subr.bf16.mxu0 0
  %893 = vmatpush1.bf16.msra.mxu0 0
  %894 = vmatprep.subr.bf16.mxu0 0
  %895 = vmatpush1.bf16.msra.mxu0 0
  %896 = vmatprep.subr.bf16.mxu0 0
  %897 = vmatpush1.bf16.msra.mxu0 0
  %898 = vmatprep.subr.bf16.mxu0 0
  %899 = vmatpush1.bf16.msra.mxu0 0
  %900 = vmatprep.subr.bf16.mxu0 0
  %901 = vmatpush1.bf16.msra.mxu0 0
  %902 = vmatprep.subr.bf16.mxu0 0
  %903 = vmatpush1.bf16.msra.mxu0 0
  %904 = vmatprep.subr.bf16.mxu0 0
  %905 = vmatpush1.bf16.msra.mxu0 0
  %906 = vmatprep.mubr.bf16.mxu0 0
  %907 = vmatmul.mubr.bf16.gmra.mrb[0].mxu0 %v21
  %v908 = vpop.f32.mrb[0].mxu0
  %v909 = vadd.f32 %v157, %v908
  %v910 = vpop.f32.mrb[0].mxu0
  %v911 = vadd.f32 %v161, %v910
  %v912 = vpop.f32.mrb[0].mxu0
  %v913 = vpop.f32.mrb[0].mxu0
  %914 = vdwg.mxu0
  %915 = vmatprep.subr.bf16.mxu0 %v621
  %916 = vmatpush1.bf16.msra.mxu0 %v620
  %917 = vmatprep.subr.bf16.mxu0 %v637
  %918 = vmatpush1.bf16.msra.mxu0 %v636
  %919 = vmatprep.subr.bf16.mxu0 %v653
  %920 = vmatpush1.bf16.msra.mxu0 %v652
  %921 = vmatprep.subr.bf16.mxu0 %v669
  %922 = vmatpush1.bf16.msra.mxu0 %v668
  %923 = vmatprep.subr.bf16.mxu0 %v685
  %924 = vmatpush1.bf16.msra.mxu0 %v684
  %925 = vmatprep.subr.bf16.mxu0 %v701
  %926 = vmatpush1.bf16.msra.mxu0 %v700
  %927 = vmatprep.subr.bf16.mxu0 %v717
  %928 = vmatpush1.bf16.msra.mxu0 %v716
  %929 = vmatprep.subr.bf16.mxu0 %v733
  %930 = vmatpush1.bf16.msra.mxu0 %v732
  %931 = vmatprep.subr.bf16.mxu0 0
  %932 = vmatpush1.bf16.msra.mxu0 0
  %933 = vmatprep.subr.bf16.mxu0 0
  %934 = vmatpush1.bf16.msra.mxu0 0
  %935 = vmatprep.subr.bf16.mxu0 0
  %936 = vmatpush1.bf16.msra.mxu0 0
  %937 = vmatprep.subr.bf16.mxu0 0
  %938 = vmatpush1.bf16.msra.mxu0 0
  %939 = vmatprep.subr.bf16.mxu0 0
  %940 = vmatpush1.bf16.msra.mxu0 0
  %941 = vmatprep.subr.bf16.mxu0 0
  %942 = vmatpush1.bf16.msra.mxu0 0
  %943 = vmatprep.subr.bf16.mxu0 0
  %944 = vmatpush1.bf16.msra.mxu0 0
  %945 = vmatprep.subr.bf16.mxu0 0
  %946 = vmatpush1.bf16.msra.mxu0 0
  %947 = vmatprep.mubr.bf16.mxu0 0
  %948 = vmatmul.mubr.bf16.gmra.mrb[0].mxu0 %v21
  %v949 = vpop.f32.mrb[0].mxu0
  %v950 = vadd.f32 %v165, %v949
  %v951 = vpop.f32.mrb[0].mxu0
  %v952 = vadd.f32 %v169, %v951
  %v953 = vpop.f32.mrb[0].mxu0
  %v954 = vpop.f32.mrb[0].mxu0
  %955 = vdwg.mxu0
  %956 = vmatprep.subr.bf16.mxu0 %v623
  %957 = vmatpush1.bf16.msra.mxu0 %v622
  %958 = vmatprep.subr.bf16.mxu0 %v639
  %959 = vmatpush1.bf16.msra.mxu0 %v638
  %960 = vmatprep.subr.bf16.mxu0 %v655
  %961 = vmatpush1.bf16.msra.mxu0 %v654
  %962 = vmatprep.subr.bf16.mxu0 %v671
  %963 = vmatpush1.bf16.msra.mxu0 %v670
  %964 = vmatprep.subr.bf16.mxu0 %v687
  %965 = vmatpush1.bf16.msra.mxu0 %v686
  %966 = vmatprep.subr.bf16.mxu0 %v703
  %967 = vmatpush1.bf16.msra.mxu0 %v702
  %968 = vmatprep.subr.bf16.mxu0 %v719
  %969 = vmatpush1.bf16.msra.mxu0 %v718
  %970 = vmatprep.subr.bf16.mxu0 %v735
  %971 = vmatpush1.bf16.msra.mxu0 %v734
  %972 = vmatprep.subr.bf16.mxu0 0
  %973 = vmatpush1.bf16.msra.mxu0 0
  %974 = vmatprep.subr.bf16.mxu0 0
  %975 = vmatpush1.bf16.msra.mxu0 0
  %976 = vmatprep.subr.bf16.mxu0 0
  %977 = vmatpush1.bf16.msra.mxu0 0
  %978 = vmatprep.subr.bf16.mxu0 0
  %979 = vmatpush1.bf16.msra.mxu0 0
  %980 = vmatprep.subr.bf16.mxu0 0
  %981 = vmatpush1.bf16.msra.mxu0 0
  %982 = vmatprep.subr.bf16.mxu0 0
  %983 = vmatpush1.bf16.msra.mxu0 0
  %984 = vmatprep.subr.bf16.mxu0 0
  %985 = vmatpush1.bf16.msra.mxu0 0
  %986 = vmatprep.subr.bf16.mxu0 0
  %987 = vmatpush1.bf16.msra.mxu0 0
  %988 = vmatprep.mubr.bf16.mxu0 0
  %989 = vmatmul.mubr.bf16.gmra.mrb[0].mxu0 %v21
  %v990 = vpop.f32.mrb[0].mxu0
  %v991 = vadd.f32 %v173, %v990
  %v992 = vpop.f32.mrb[0].mxu0
  %v993 = vadd.f32 %v177, %v992
  %v994 = vpop.f32.mrb[0].mxu0
  %v995 = vpop.f32.mrb[0].mxu0
  %996 = vdwg.mxu0
  %997 = vmatprep.subr.bf16.mxu0 %v625
  %998 = vmatpush1.bf16.msra.mxu0 %v624
  %999 = vmatprep.subr.bf16.mxu0 %v641
  %1000 = vmatpush1.bf16.msra.mxu0 %v640
  %1001 = vmatprep.subr.bf16.mxu0 %v657
  %1002 = vmatpush1.bf16.msra.mxu0 %v656
  %1003 = vmatprep.subr.bf16.mxu0 %v673
  %1004 = vmatpush1.bf16.msra.mxu0 %v672
  %1005 = vmatprep.subr.bf16.mxu0 %v689
  %1006 = vmatpush1.bf16.msra.mxu0 %v688
  %1007 = vmatprep.subr.bf16.mxu0 %v705
  %1008 = vmatpush1.bf16.msra.mxu0 %v704
  %1009 = vmatprep.subr.bf16.mxu0 %v721
  %1010 = vmatpush1.bf16.msra.mxu0 %v720
  %1011 = vmatprep.subr.bf16.mxu0 %v737
  %1012 = vmatpush1.bf16.msra.mxu0 %v736
  %1013 = vmatprep.subr.bf16.mxu0 0
  %1014 = vmatpush1.bf16.msra.mxu0 0
  %1015 = vmatprep.subr.bf16.mxu0 0
  %1016 = vmatpush1.bf16.msra.mxu0 0
  %1017 = vmatprep.subr.bf16.mxu0 0
  %1018 = vmatpush1.bf16.msra.mxu0 0
  %1019 = vmatprep.subr.bf16.mxu0 0
  %1020 = vmatpush1.bf16.msra.mxu0 0
  %1021 = vmatprep.subr.bf16.mxu0 0
  %1022 = vmatpush1.bf16.msra.mxu0 0
  %1023 = vmatprep.subr.bf16.mxu0 0
  %1024 = vmatpush1.bf16.msra.mxu0 0
  %1025 = vmatprep.subr.bf16.mxu0 0
  %1026 = vmatpush1.bf16.msra.mxu0 0
  %1027 = vmatprep.subr.bf16.mxu0 0
  %1028 = vmatpush1.bf16.msra.mxu0 0
  %1029 = vmatprep.mubr.bf16.mxu0 0
  %1030 = vmatmul.mubr.bf16.gmra.mrb[0].mxu0 %v21
  %v1031 = vpop.f32.mrb[0].mxu0
  %v1032 = vadd.f32 %v181, %v1031
  %v1033 = vpop.f32.mrb[0].mxu0
  %v1034 = vadd.f32 %v185, %v1033
  %v1035 = vpop.f32.mrb[0].mxu0
  %v1036 = vpop.f32.mrb[0].mxu0
  %1037 = vdwg.mxu0
  %1038 = vmatprep.subr.bf16.mxu0 %v627
  %1039 = vmatpush1.bf16.msra.mxu0 %v626
  %1040 = vmatprep.subr.bf16.mxu0 %v643
  %1041 = vmatpush1.bf16.msra.mxu0 %v642
  %1042 = vmatprep.subr.bf16.mxu0 %v659
  %1043 = vmatpush1.bf16.msra.mxu0 %v658
  %1044 = vmatprep.subr.bf16.mxu0 %v675
  %1045 = vmatpush1.bf16.msra.mxu0 %v674
  %1046 = vmatprep.subr.bf16.mxu0 %v691
  %1047 = vmatpush1.bf16.msra.mxu0 %v690
  %1048 = vmatprep.subr.bf16.mxu0 %v707
  %1049 = vmatpush1.bf16.msra.mxu0 %v706
  %1050 = vmatprep.subr.bf16.mxu0 %v723
  %1051 = vmatpush1.bf16.msra.mxu0 %v722
  %1052 = vmatprep.subr.bf16.mxu0 %v739
  %1053 = vmatpush1.bf16.msra.mxu0 %v738
  %1054 = vmatprep.subr.bf16.mxu0 0
  %1055 = vmatpush1.bf16.msra.mxu0 0
  %1056 = vmatprep.subr.bf16.mxu0 0
  %1057 = vmatpush1.bf16.msra.mxu0 0
  %1058 = vmatprep.subr.bf16.mxu0 0
  %1059 = vmatpush1.bf16.msra.mxu0 0
  %1060 = vmatprep.subr.bf16.mxu0 0
  %1061 = vmatpush1.bf16.msra.mxu0 0
  %1062 = vmatprep.subr.bf16.mxu0 0
  %1063 = vmatpush1.bf16.msra.mxu0 0
  %1064 = vmatprep.subr.bf16.mxu0 0
  %1065 = vmatpush1.bf16.msra.mxu0 0
  %1066 = vmatprep.subr.bf16.mxu0 0
  %1067 = vmatpush1.bf16.msra.mxu0 0
  %1068 = vmatprep.subr.bf16.mxu0 0
  %1069 = vmatpush1.bf16.msra.mxu0 0
  %1070 = vmatprep.mubr.bf16.mxu0 0
  %1071 = vmatmul.mubr.bf16.gmra.mrb[0].mxu0 %v21
  %v1072 = vpop.f32.mrb[0].mxu0
  %v1073 = vadd.f32 %v189, %v1072
  %v1074 = vpop.f32.mrb[0].mxu0
  %v1075 = vadd.f32 %v193, %v1074
  %v1076 = vpop.f32.mrb[0].mxu0
  %v1077 = vpop.f32.mrb[0].mxu0
  %1078 = vdwg.mxu0
  %1079 = vmatprep.subr.bf16.mxu0 %v629
  %1080 = vmatpush1.bf16.msra.mxu0 %v628
  %1081 = vmatprep.subr.bf16.mxu0 %v645
  %1082 = vmatpush1.bf16.msra.mxu0 %v644
  %1083 = vmatprep.subr.bf16.mxu0 %v661
  %1084 = vmatpush1.bf16.msra.mxu0 %v660
  %1085 = vmatprep.subr.bf16.mxu0 %v677
  %1086 = vmatpush1.bf16.msra.mxu0 %v676
  %1087 = vmatprep.subr.bf16.mxu0 %v693
  %1088 = vmatpush1.bf16.msra.mxu0 %v692
  %1089 = vmatprep.subr.bf16.mxu0 %v709
  %1090 = vmatpush1.bf16.msra.mxu0 %v708
  %1091 = vmatprep.subr.bf16.mxu0 %v725
  %1092 = vmatpush1.bf16.msra.mxu0 %v724
  %1093 = vmatprep.subr.bf16.mxu0 %v741
  %1094 = vmatpush1.bf16.msra.mxu0 %v740
  %1095 = vmatprep.subr.bf16.mxu0 0
  %1096 = vmatpush1.bf16.msra.mxu0 0
  %1097 = vmatprep.subr.bf16.mxu0 0
  %1098 = vmatpush1.bf16.msra.mxu0 0
  %1099 = vmatprep.subr.bf16.mxu0 0
  %1100 = vmatpush1.bf16.msra.mxu0 0
  %1101 = vmatprep.subr.bf16.mxu0 0
  %1102 = vmatpush1.bf16.msra.mxu0 0
  %1103 = vmatprep.subr.bf16.mxu0 0
  %1104 = vmatpush1.bf16.msra.mxu0 0
  %1105 = vmatprep.subr.bf16.mxu0 0
  %1106 = vmatpush1.bf16.msra.mxu0 0
  %1107 = vmatprep.subr.bf16.mxu0 0
  %1108 = vmatpush1.bf16.msra.mxu0 0
  %1109 = vmatprep.subr.bf16.mxu0 0
  %1110 = vmatpush1.bf16.msra.mxu0 0
  %1111 = vmatprep.mubr.bf16.mxu0 0
  %1112 = vmatmul.mubr.bf16.gmra.mrb[0].mxu0 %v21
  %v1113 = vpop.f32.mrb[0].mxu0
  %v1114 = vadd.f32 %v197, %v1113
  %v1115 = vpop.f32.mrb[0].mxu0
  %v1116 = vadd.f32 %v201, %v1115
  %v1117 = vpop.f32.mrb[0].mxu0
  %v1118 = vpop.f32.mrb[0].mxu0
  %1119 = vdwg.mxu0
  %1120 = vmatprep.subr.bf16.mxu0 %v631
  %1121 = vmatpush1.bf16.msra.mxu0 %v630
  %1122 = vmatprep.subr.bf16.mxu0 %v647
  %1123 = vmatpush1.bf16.msra.mxu0 %v646
  %1124 = vmatprep.subr.bf16.mxu0 %v663
  %1125 = vmatpush1.bf16.msra.mxu0 %v662
  %1126 = vmatprep.subr.bf16.mxu0 %v679
  %1127 = vmatpush1.bf16.msra.mxu0 %v678
  %1128 = vmatprep.subr.bf16.mxu0 %v695
  %1129 = vmatpush1.bf16.msra.mxu0 %v694
  %1130 = vmatprep.subr.bf16.mxu0 %v711
  %1131 = vmatpush1.bf16.msra.mxu0 %v710
  %1132 = vmatprep.subr.bf16.mxu0 %v727
  %1133 = vmatpush1.bf16.msra.mxu0 %v726
  %1134 = vmatprep.subr.bf16.mxu0 %v743
  %1135 = vmatpush1.bf16.msra.mxu0 %v742
  %1136 = vmatprep.subr.bf16.mxu0 0
  %1137 = vmatpush1.bf16.msra.mxu0 0
  %1138 = vmatprep.subr.bf16.mxu0 0
  %1139 = vmatpush1.bf16.msra.mxu0 0
  %1140 = vmatprep.subr.bf16.mxu0 0
  %1141 = vmatpush1.bf16.msra.mxu0 0
  %1142 = vmatprep.subr.bf16.mxu0 0
  %1143 = vmatpush1.bf16.msra.mxu0 0
  %1144 = vmatprep.subr.bf16.mxu0 0
  %1145 = vmatpush1.bf16.msra.mxu0 0
  %1146 = vmatprep.subr.bf16.mxu0 0
  %1147 = vmatpush1.bf16.msra.mxu0 0
  %1148 = vmatprep.subr.bf16.mxu0 0
  %1149 = vmatpush1.bf16.msra.mxu0 0
  %1150 = vmatprep.subr.bf16.mxu0 0
  %1151 = vmatpush1.bf16.msra.mxu0 0
  %1152 = vmatprep.mubr.bf16.mxu0 0
  %1153 = vmatmul.mubr.bf16.gmra.mrb[0].mxu0 %v21
  %v1154 = vpop.f32.mrb[0].mxu0
  %v1155 = vadd.f32 %v205, %v1154
  %v1156 = vpop.f32.mrb[0].mxu0
  %v1157 = vadd.f32 %v209, %v1156
  %v1158 = vpop.f32.mrb[0].mxu0
  %v1159 = vpop.f32.mrb[0].mxu0
  %1160 = vdwg.mxu0
  %1161 = vmatprep.subr.bf16.mxu0 %v633
  %1162 = vmatpush1.bf16.msra.mxu0 %v632
  %1163 = vmatprep.subr.bf16.mxu0 %v649
  %1164 = vmatpush1.bf16.msra.mxu0 %v648
  %1165 = vmatprep.subr.bf16.mxu0 %v665
  %1166 = vmatpush1.bf16.msra.mxu0 %v664
  %1167 = vmatprep.subr.bf16.mxu0 %v681
  %1168 = vmatpush1.bf16.msra.mxu0 %v680
  %1169 = vmatprep.subr.bf16.mxu0 %v697
  %1170 = vmatpush1.bf16.msra.mxu0 %v696
  %1171 = vmatprep.subr.bf16.mxu0 %v713
  %1172 = vmatpush1.bf16.msra.mxu0 %v712
  %1173 = vmatprep.subr.bf16.mxu0 %v729
  %1174 = vmatpush1.bf16.msra.mxu0 %v728
  %1175 = vmatprep.subr.bf16.mxu0 %v745
  %1176 = vmatpush1.bf16.msra.mxu0 %v744
  %1177 = vmatprep.subr.bf16.mxu0 0
  %1178 = vmatpush1.bf16.msra.mxu0 0
  %1179 = vmatprep.subr.bf16.mxu0 0
  %1180 = vmatpush1.bf16.msra.mxu0 0
  %1181 = vmatprep.subr.bf16.mxu0 0
  %1182 = vmatpush1.bf16.msra.mxu0 0
  %1183 = vmatprep.subr.bf16.mxu0 0
  %1184 = vmatpush1.bf16.msra.mxu0 0
  %1185 = vmatprep.subr.bf16.mxu0 0
  %1186 = vmatpush1.bf16.msra.mxu0 0
  %1187 = vmatprep.subr.bf16.mxu0 0
  %1188 = vmatpush1.bf16.msra.mxu0 0
  %1189 = vmatprep.subr.bf16.mxu0 0
  %1190 = vmatpush1.bf16.msra.mxu0 0
  %1191 = vmatprep.subr.bf16.mxu0 0
  %1192 = vmatpush1.bf16.msra.mxu0 0
  %1193 = vmatprep.mubr.bf16.mxu0 0
  %1194 = vmatmul.mubr.bf16.gmra.mrb[0].mxu0 %v21
  %v1195 = vpop.f32.mrb[0].mxu0
  %v1196 = vadd.f32 %v213, %v1195
  %v1197 = vpop.f32.mrb[0].mxu0
  %v1198 = vadd.f32 %v217, %v1197
  %v1199 = vpop.f32.mrb[0].mxu0
  %v1200 = vpop.f32.mrb[0].mxu0
  %1201 = vdwg.mxu0
  %v1202 = vmax.f32 %v909, 0.0
  %v1203 = vmax.f32 %v911, 0.0
  %v1204 = vmax.f32 %v950, 0.0
  %v1205 = vmax.f32 %v952, 0.0
  %v1206 = vmax.f32 %v991, 0.0
  %v1207 = vmax.f32 %v993, 0.0
  %v1208 = vmax.f32 %v1032, 0.0
  %v1209 = vmax.f32 %v1034, 0.0
  %v1210 = vmax.f32 %v1073, 0.0
  %v1211 = vmax.f32 %v1075, 0.0
  %v1212 = vmax.f32 %v1114, 0.0
  %v1213 = vmax.f32 %v1116, 0.0
  %v1214 = vmax.f32 %v1155, 0.0
  %v1215 = vmax.f32 %v1157, 0.0
  %v1216 = vmax.f32 %v1196, 0.0
  %v1217 = vmax.f32 %v1198, 0.0
  %v1218 = vpack.c.bf16 %v1202, %v1202
  %v1219 = vpack.c.bf16 %v1203, %v1203
  %v1220 = vpack.c.bf16 %v1204, %v1204
  %v1221 = vpack.c.bf16 %v1205, %v1205
  %v1222 = vpack.c.bf16 %v1206, %v1206
  %v1223 = vpack.c.bf16 %v1207, %v1207
  %v1224 = vpack.c.bf16 %v1208, %v1208
  %v1225 = vpack.c.bf16 %v1209, %v1209
  %v1226 = vpack.c.bf16 %v1210, %v1210
  %v1227 = vpack.c.bf16 %v1211, %v1211
  %v1228 = vpack.c.bf16 %v1212, %v1212
  %v1229 = vpack.c.bf16 %v1213, %v1213
  %v1230 = vpack.c.bf16 %v1214, %v1214
  %v1231 = vpack.c.bf16 %v1215, %v1215
  %v1232 = vpack.c.bf16 %v1216, %v1216
  %v1233 = vpack.c.bf16 %v1217, %v1217
  %v1234 = vld [vmem:[%s3] sm:$0xff]
  %v1235 = vld [vmem:[%s3 + $0x8] sm:$0xff]
  %v1236 = vld [vmem:[%s3 + $0x10] sm:$0xff]
  %v1237 = vld [vmem:[%s3 + $0x18] sm:$0xff]
  %v1238 = vld [vmem:[%s3 + $0x20] sm:$0xff]
  %v1239 = vld [vmem:[%s3 + $0x28] sm:$0xff]
  %v1240 = vld [vmem:[%s3 + $0x30] sm:$0xff]
  %v1241 = vld [vmem:[%s3 + $0x38] sm:$0xff]
  %v1242 = vld [vmem:[%s3 + $0x40] sm:$0xff]
  %v1243 = vld [vmem:[%s3 + $0x48] sm:$0xff]
  %v1244 = vld [vmem:[%s3 + $0x50] sm:$0xff]
  %v1245 = vld [vmem:[%s3 + $0x58] sm:$0xff]
  %v1246 = vld [vmem:[%s3 + $0x60] sm:$0xff]
  %v1247 = vld [vmem:[%s3 + $0x68] sm:$0xff]
  %v1248 = vld [vmem:[%s3 + $0x70] sm:$0xff]
  %v1249 = vld [vmem:[%s3 + $0x78] sm:$0xff]
  %v1250 = vld [vmem:[%s3 + $0x80] sm:$0xff]
  %v1251 = vld [vmem:[%s3 + $0x88] sm:$0xff]
  %v1252 = vld [vmem:[%s3 + $0x90] sm:$0xff]
  %v1253 = vld [vmem:[%s3 + $0x98] sm:$0xff]
  %v1254 = vld [vmem:[%s3 + $0xa0] sm:$0xff]
  %v1255 = vld [vmem:[%s3 + $0xa8] sm:$0xff]
  %v1256 = vld [vmem:[%s3 + $0xb0] sm:$0xff]
  %v1257 = vld [vmem:[%s3 + $0xb8] sm:$0xff]
  %v1258 = vld [vmem:[%s3 + $0xc0] sm:$0xff]
  %v1259 = vld [vmem:[%s3 + $0xc8] sm:$0xff]
  %v1260 = vld [vmem:[%s3 + $0xd0] sm:$0xff]
  %v1261 = vld [vmem:[%s3 + $0xd8] sm:$0xff]
  %v1262 = vld [vmem:[%s3 + $0xe0] sm:$0xff]
  %v1263 = vld [vmem:[%s3 + $0xe8] sm:$0xff]
  %v1264 = vld [vmem:[%s3 + $0xf0] sm:$0xff]
  %v1265 = vld [vmem:[%s3 + $0xf8] sm:$0xff]
  %v1266 = vld [vmem:[%s3 + $0x100] sm:$0xff]
  %v1267 = vld [vmem:[%s3 + $0x108] sm:$0xff]
  %v1268 = vld [vmem:[%s3 + $0x110] sm:$0xff]
  %v1269 = vld [vmem:[%s3 + $0x118] sm:$0xff]
  %v1270 = vld [vmem:[%s3 + $0x120] sm:$0xff]
  %v1271 = vld [vmem:[%s3 + $0x128] sm:$0xff]
  %v1272 = vld [vmem:[%s3 + $0x130] sm:$0xff]
  %v1273 = vld [vmem:[%s3 + $0x138] sm:$0xff]
  %v1274 = vld [vmem:[%s3 + $0x140] sm:$0xff]
  %v1275 = vld [vmem:[%s3 + $0x148] sm:$0xff]
  %v1276 = vld [vmem:[%s3 + $0x150] sm:$0xff]
  %v1277 = vld [vmem:[%s3 + $0x158] sm:$0xff]
  %v1278 = vld [vmem:[%s3 + $0x160] sm:$0xff]
  %v1279 = vld [vmem:[%s3 + $0x168] sm:$0xff]
  %v1280 = vld [vmem:[%s3 + $0x170] sm:$0xff]
  %v1281 = vld [vmem:[%s3 + $0x178] sm:$0xff]
  %v1282 = vld [vmem:[%s3 + $0x180] sm:$0xff]
  %v1283 = vld [vmem:[%s3 + $0x188] sm:$0xff]
  %v1284 = vld [vmem:[%s3 + $0x190] sm:$0xff]
  %v1285 = vld [vmem:[%s3 + $0x198] sm:$0xff]
  %v1286 = vld [vmem:[%s3 + $0x1a0] sm:$0xff]
  %v1287 = vld [vmem:[%s3 + $0x1a8] sm:$0xff]
  %v1288 = vld [vmem:[%s3 + $0x1b0] sm:$0xff]
  %v1289 = vld [vmem:[%s3 + $0x1b8] sm:$0xff]
  %v1290 = vld [vmem:[%s3 + $0x1c0] sm:$0xff]
  %v1291 = vld [vmem:[%s3 + $0x1c8] sm:$0xff]
  %v1292 = vld [vmem:[%s3 + $0x1d0] sm:$0xff]
  %v1293 = vld [vmem:[%s3 + $0x1d8] sm:$0xff]
  %v1294 = vld [vmem:[%s3 + $0x1e0] sm:$0xff]
  %v1295 = vld [vmem:[%s3 + $0x1e8] sm:$0xff]
  %v1296 = vld [vmem:[%s3 + $0x1f0] sm:$0xff]
  %v1297 = vld [vmem:[%s3 + $0x1f8] sm:$0xff]
  %v1298 = vld [vmem:[%s3 + $0x200] sm:$0xff]
  %v1299 = vld [vmem:[%s3 + $0x208] sm:$0xff]
  %v1300 = vld [vmem:[%s3 + $0x210] sm:$0xff]
  %v1301 = vld [vmem:[%s3 + $0x218] sm:$0xff]
  %v1302 = vld [vmem:[%s3 + $0x220] sm:$0xff]
  %v1303 = vld [vmem:[%s3 + $0x228] sm:$0xff]
  %v1304 = vld [vmem:[%s3 + $0x230] sm:$0xff]
  %v1305 = vld [vmem:[%s3 + $0x238] sm:$0xff]
  %v1306 = vld [vmem:[%s3 + $0x240] sm:$0xff]
  %v1307 = vld [vmem:[%s3 + $0x248] sm:$0xff]
  %v1308 = vld [vmem:[%s3 + $0x250] sm:$0xff]
  %v1309 = vld [vmem:[%s3 + $0x258] sm:$0xff]
  %v1310 = vld [vmem:[%s3 + $0x260] sm:$0xff]
  %v1311 = vld [vmem:[%s3 + $0x268] sm:$0xff]
  %v1312 = vld [vmem:[%s3 + $0x270] sm:$0xff]
  %v1313 = vld [vmem:[%s3 + $0x278] sm:$0xff]
  %v1314 = vld [vmem:[%s3 + $0x280] sm:$0xff]
  %v1315 = vld [vmem:[%s3 + $0x288] sm:$0xff]
  %v1316 = vld [vmem:[%s3 + $0x290] sm:$0xff]
  %v1317 = vld [vmem:[%s3 + $0x298] sm:$0xff]
  %v1318 = vld [vmem:[%s3 + $0x2a0] sm:$0xff]
  %v1319 = vld [vmem:[%s3 + $0x2a8] sm:$0xff]
  %v1320 = vld [vmem:[%s3 + $0x2b0] sm:$0xff]
  %v1321 = vld [vmem:[%s3 + $0x2b8] sm:$0xff]
  %v1322 = vld [vmem:[%s3 + $0x2c0] sm:$0xff]
  %v1323 = vld [vmem:[%s3 + $0x2c8] sm:$0xff]
  %v1324 = vld [vmem:[%s3 + $0x2d0] sm:$0xff]
  %v1325 = vld [vmem:[%s3 + $0x2d8] sm:$0xff]
  %v1326 = vld [vmem:[%s3 + $0x2e0] sm:$0xff]
  %v1327 = vld [vmem:[%s3 + $0x2e8] sm:$0xff]
  %v1328 = vld [vmem:[%s3 + $0x2f0] sm:$0xff]
  %v1329 = vld [vmem:[%s3 + $0x2f8] sm:$0xff]
  %v1330 = vld [vmem:[%s3 + $0x300] sm:$0xff]
  %v1331 = vld [vmem:[%s3 + $0x308] sm:$0xff]
  %v1332 = vld [vmem:[%s3 + $0x310] sm:$0xff]
  %v1333 = vld [vmem:[%s3 + $0x318] sm:$0xff]
  %v1334 = vld [vmem:[%s3 + $0x320] sm:$0xff]
  %v1335 = vld [vmem:[%s3 + $0x328] sm:$0xff]
  %v1336 = vld [vmem:[%s3 + $0x330] sm:$0xff]
  %v1337 = vld [vmem:[%s3 + $0x338] sm:$0xff]
  %v1338 = vld [vmem:[%s3 + $0x340] sm:$0xff]
  %v1339 = vld [vmem:[%s3 + $0x348] sm:$0xff]
  %v1340 = vld [vmem:[%s3 + $0x350] sm:$0xff]
  %v1341 = vld [vmem:[%s3 + $0x358] sm:$0xff]
  %v1342 = vld [vmem:[%s3 + $0x360] sm:$0xff]
  %v1343 = vld [vmem:[%s3 + $0x368] sm:$0xff]
  %v1344 = vld [vmem:[%s3 + $0x370] sm:$0xff]
  %v1345 = vld [vmem:[%s3 + $0x378] sm:$0xff]
  %v1346 = vld [vmem:[%s3 + $0x380] sm:$0xff]
  %v1347 = vld [vmem:[%s3 + $0x388] sm:$0xff]
  %v1348 = vld [vmem:[%s3 + $0x390] sm:$0xff]
  %v1349 = vld [vmem:[%s3 + $0x398] sm:$0xff]
  %v1350 = vld [vmem:[%s3 + $0x3a0] sm:$0xff]
  %v1351 = vld [vmem:[%s3 + $0x3a8] sm:$0xff]
  %v1352 = vld [vmem:[%s3 + $0x3b0] sm:$0xff]
  %v1353 = vld [vmem:[%s3 + $0x3b8] sm:$0xff]
  %v1354 = vld [vmem:[%s3 + $0x3c0] sm:$0xff]
  %v1355 = vld [vmem:[%s3 + $0x3c8] sm:$0xff]
  %v1356 = vld [vmem:[%s3 + $0x3d0] sm:$0xff]
  %v1357 = vld [vmem:[%s3 + $0x3d8] sm:$0xff]
  %v1358 = vld [vmem:[%s3 + $0x3e0] sm:$0xff]
  %v1359 = vld [vmem:[%s3 + $0x3e8] sm:$0xff]
  %v1360 = vld [vmem:[%s3 + $0x3f0] sm:$0xff]
  %v1361 = vld [vmem:[%s3 + $0x3f8] sm:$0xff]
  %v1362 = vld [vmem:[%s3 + $0x400] sm:$0xff]
  %v1363 = vld [vmem:[%s3 + $0x408] sm:$0xff]
  %v1364 = vld [vmem:[%s3 + $0x410] sm:$0xff]
  %v1365 = vld [vmem:[%s3 + $0x418] sm:$0xff]
  %v1366 = vld [vmem:[%s3 + $0x420] sm:$0xff]
  %v1367 = vld [vmem:[%s3 + $0x428] sm:$0xff]
  %v1368 = vld [vmem:[%s3 + $0x430] sm:$0xff]
  %v1369 = vld [vmem:[%s3 + $0x438] sm:$0xff]
  %v1370 = vld [vmem:[%s3 + $0x440] sm:$0xff]
  %v1371 = vld [vmem:[%s3 + $0x448] sm:$0xff]
  %v1372 = vld [vmem:[%s3 + $0x450] sm:$0xff]
  %v1373 = vld [vmem:[%s3 + $0x458] sm:$0xff]
  %v1374 = vld [vmem:[%s3 + $0x460] sm:$0xff]
  %v1375 = vld [vmem:[%s3 + $0x468] sm:$0xff]
  %v1376 = vld [vmem:[%s3 + $0x470] sm:$0xff]
  %v1377 = vld [vmem:[%s3 + $0x478] sm:$0xff]
  %v1378 = vld [vmem:[%s3 + $0x480] sm:$0xff]
  %v1379 = vld [vmem:[%s3 + $0x488] sm:$0xff]
  %v1380 = vld [vmem:[%s3 + $0x490] sm:$0xff]
  %v1381 = vld [vmem:[%s3 + $0x498] sm:$0xff]
  %v1382 = vld [vmem:[%s3 + $0x4a0] sm:$0xff]
  %v1383 = vld [vmem:[%s3 + $0x4a8] sm:$0xff]
  %v1384 = vld [vmem:[%s3 + $0x4b0] sm:$0xff]
  %v1385 = vld [vmem:[%s3 + $0x4b8] sm:$0xff]
  %v1386 = vld [vmem:[%s3 + $0x4c0] sm:$0xff]
  %v1387 = vld [vmem:[%s3 + $0x4c8] sm:$0xff]
  %v1388 = vld [vmem:[%s3 + $0x4d0] sm:$0xff]
  %v1389 = vld [vmem:[%s3 + $0x4d8] sm:$0xff]
  %v1390 = vld [vmem:[%s3 + $0x4e0] sm:$0xff]
  %v1391 = vld [vmem:[%s3 + $0x4e8] sm:$0xff]
  %v1392 = vld [vmem:[%s3 + $0x4f0] sm:$0xff]
  %v1393 = vld [vmem:[%s3 + $0x4f8] sm:$0xff]
  %v1394 = vld [vmem:[%s3 + $0x500] sm:$0xff]
  %v1395 = vld [vmem:[%s3 + $0x508] sm:$0xff]
  %v1396 = vld [vmem:[%s3 + $0x510] sm:$0xff]
  %v1397 = vld [vmem:[%s3 + $0x518] sm:$0xff]
  %v1398 = vld [vmem:[%s3 + $0x520] sm:$0xff]
  %v1399 = vld [vmem:[%s3 + $0x528] sm:$0xff]
  %v1400 = vld [vmem:[%s3 + $0x530] sm:$0xff]
  %v1401 = vld [vmem:[%s3 + $0x538] sm:$0xff]
  %v1402 = vld [vmem:[%s3 + $0x540] sm:$0xff]
  %v1403 = vld [vmem:[%s3 + $0x548] sm:$0xff]
  %v1404 = vld [vmem:[%s3 + $0x550] sm:$0xff]
  %v1405 = vld [vmem:[%s3 + $0x558] sm:$0xff]
  %v1406 = vld [vmem:[%s3 + $0x560] sm:$0xff]
  %v1407 = vld [vmem:[%s3 + $0x568] sm:$0xff]
  %v1408 = vld [vmem:[%s3 + $0x570] sm:$0xff]
  %v1409 = vld [vmem:[%s3 + $0x578] sm:$0xff]
  %v1410 = vld [vmem:[%s3 + $0x580] sm:$0xff]
  %v1411 = vld [vmem:[%s3 + $0x588] sm:$0xff]
  %v1412 = vld [vmem:[%s3 + $0x590] sm:$0xff]
  %v1413 = vld [vmem:[%s3 + $0x598] sm:$0xff]
  %v1414 = vld [vmem:[%s3 + $0x5a0] sm:$0xff]
  %v1415 = vld [vmem:[%s3 + $0x5a8] sm:$0xff]
  %v1416 = vld [vmem:[%s3 + $0x5b0] sm:$0xff]
  %v1417 = vld [vmem:[%s3 + $0x5b8] sm:$0xff]
  %v1418 = vld [vmem:[%s3 + $0x5c0] sm:$0xff]
  %v1419 = vld [vmem:[%s3 + $0x5c8] sm:$0xff]
  %v1420 = vld [vmem:[%s3 + $0x5d0] sm:$0xff]
  %v1421 = vld [vmem:[%s3 + $0x5d8] sm:$0xff]
  %v1422 = vld [vmem:[%s3 + $0x5e0] sm:$0xff]
  %v1423 = vld [vmem:[%s3 + $0x5e8] sm:$0xff]
  %v1424 = vld [vmem:[%s3 + $0x5f0] sm:$0xff]
  %v1425 = vld [vmem:[%s3 + $0x5f8] sm:$0xff]
  %v1426 = vld [vmem:[%s3 + $0x600] sm:$0xff]
  %v1427 = vld [vmem:[%s3 + $0x608] sm:$0xff]
  %v1428 = vld [vmem:[%s3 + $0x610] sm:$0xff]
  %v1429 = vld [vmem:[%s3 + $0x618] sm:$0xff]
  %v1430 = vld [vmem:[%s3 + $0x620] sm:$0xff]
  %v1431 = vld [vmem:[%s3 + $0x628] sm:$0xff]
  %v1432 = vld [vmem:[%s3 + $0x630] sm:$0xff]
  %v1433 = vld [vmem:[%s3 + $0x638] sm:$0xff]
  %v1434 = vld [vmem:[%s3 + $0x640] sm:$0xff]
  %v1435 = vld [vmem:[%s3 + $0x648] sm:$0xff]
  %v1436 = vld [vmem:[%s3 + $0x650] sm:$0xff]
  %v1437 = vld [vmem:[%s3 + $0x658] sm:$0xff]
  %v1438 = vld [vmem:[%s3 + $0x660] sm:$0xff]
  %v1439 = vld [vmem:[%s3 + $0x668] sm:$0xff]
  %v1440 = vld [vmem:[%s3 + $0x670] sm:$0xff]
  %v1441 = vld [vmem:[%s3 + $0x678] sm:$0xff]
  %v1442 = vld [vmem:[%s3 + $0x680] sm:$0xff]
  %v1443 = vld [vmem:[%s3 + $0x688] sm:$0xff]
  %v1444 = vld [vmem:[%s3 + $0x690] sm:$0xff]
  %v1445 = vld [vmem:[%s3 + $0x698] sm:$0xff]
  %v1446 = vld [vmem:[%s3 + $0x6a0] sm:$0xff]
  %v1447 = vld [vmem:[%s3 + $0x6a8] sm:$0xff]
  %v1448 = vld [vmem:[%s3 + $0x6b0] sm:$0xff]
  %v1449 = vld [vmem:[%s3 + $0x6b8] sm:$0xff]
  %v1450 = vld [vmem:[%s3 + $0x6c0] sm:$0xff]
  %v1451 = vld [vmem:[%s3 + $0x6c8] sm:$0xff]
  %v1452 = vld [vmem:[%s3 + $0x6d0] sm:$0xff]
  %v1453 = vld [vmem:[%s3 + $0x6d8] sm:$0xff]
  %v1454 = vld [vmem:[%s3 + $0x6e0] sm:$0xff]
  %v1455 = vld [vmem:[%s3 + $0x6e8] sm:$0xff]
  %v1456 = vld [vmem:[%s3 + $0x6f0] sm:$0xff]
  %v1457 = vld [vmem:[%s3 + $0x6f8] sm:$0xff]
  %v1458 = vld [vmem:[%s3 + $0x700] sm:$0xff]
  %v1459 = vld [vmem:[%s3 + $0x708] sm:$0xff]
  %v1460 = vld [vmem:[%s3 + $0x710] sm:$0xff]
  %v1461 = vld [vmem:[%s3 + $0x718] sm:$0xff]
  %v1462 = vld [vmem:[%s3 + $0x720] sm:$0xff]
  %v1463 = vld [vmem:[%s3 + $0x728] sm:$0xff]
  %v1464 = vld [vmem:[%s3 + $0x730] sm:$0xff]
  %v1465 = vld [vmem:[%s3 + $0x738] sm:$0xff]
  %v1466 = vld [vmem:[%s3 + $0x740] sm:$0xff]
  %v1467 = vld [vmem:[%s3 + $0x748] sm:$0xff]
  %v1468 = vld [vmem:[%s3 + $0x750] sm:$0xff]
  %v1469 = vld [vmem:[%s3 + $0x758] sm:$0xff]
  %v1470 = vld [vmem:[%s3 + $0x760] sm:$0xff]
  %v1471 = vld [vmem:[%s3 + $0x768] sm:$0xff]
  %v1472 = vld [vmem:[%s3 + $0x770] sm:$0xff]
  %v1473 = vld [vmem:[%s3 + $0x778] sm:$0xff]
  %v1474 = vld [vmem:[%s3 + $0x780] sm:$0xff]
  %v1475 = vld [vmem:[%s3 + $0x788] sm:$0xff]
  %v1476 = vld [vmem:[%s3 + $0x790] sm:$0xff]
  %v1477 = vld [vmem:[%s3 + $0x798] sm:$0xff]
  %v1478 = vld [vmem:[%s3 + $0x7a0] sm:$0xff]
  %v1479 = vld [vmem:[%s3 + $0x7a8] sm:$0xff]
  %v1480 = vld [vmem:[%s3 + $0x7b0] sm:$0xff]
  %v1481 = vld [vmem:[%s3 + $0x7b8] sm:$0xff]
  %v1482 = vld [vmem:[%s3 + $0x7c0] sm:$0xff]
  %v1483 = vld [vmem:[%s3 + $0x7c8] sm:$0xff]
  %v1484 = vld [vmem:[%s3 + $0x7d0] sm:$0xff]
  %v1485 = vld [vmem:[%s3 + $0x7d8] sm:$0xff]
  %v1486 = vld [vmem:[%s3 + $0x7e0] sm:$0xff]
  %v1487 = vld [vmem:[%s3 + $0x7e8] sm:$0xff]
  %v1488 = vld [vmem:[%s3 + $0x7f0] sm:$0xff]
  %v1489 = vld [vmem:[%s3 + $0x7f8] sm:$0xff]
  %v1490 = vld [vmem:[%s4] sm:$0x3]
  %v1492 = vlaneseq
  %v1493 = vshrl.u32 %v1492, 7
  %v1494 = vsub.s32 0, %v1493
  %v1495 = vrot.slane %v1490, %v1494
  %v1496 = vlaneseq
  %v1497 = vshrl.u32 %v1496, 7
  %v1498 = vsub.s32 1, %v1497
  %v1499 = vrot.slane %v1490, %v1498
  %v1758 = vunpack.c.l.b16 %v1234
  %v1759 = vunpack.c.h.b16 %v1234
  %v1760 = vunpack.c.l.b16 %v1235
  %v1761 = vunpack.c.h.b16 %v1235
  %v1762 = vunpack.c.l.b16 %v1236
  %v1763 = vunpack.c.h.b16 %v1236
  %v1764 = vunpack.c.l.b16 %v1237
  %v1765 = vunpack.c.h.b16 %v1237
  %v1766 = vunpack.c.l.b16 %v1238
  %v1767 = vunpack.c.h.b16 %v1238
  %v1768 = vunpack.c.l.b16 %v1239
  %v1769 = vunpack.c.h.b16 %v1239
  %v1770 = vunpack.c.l.b16 %v1240
  %v1771 = vunpack.c.h.b16 %v1240
  %v1772 = vunpack.c.l.b16 %v1241
  %v1773 = vunpack.c.h.b16 %v1241
  %v1774 = vunpack.c.l.b16 %v1242
  %v1775 = vunpack.c.h.b16 %v1242
  %v1776 = vunpack.c.l.b16 %v1243
  %v1777 = vunpack.c.h.b16 %v1243
  %v1778 = vunpack.c.l.b16 %v1244
  %v1779 = vunpack.c.h.b16 %v1244
  %v1780 = vunpack.c.l.b16 %v1245
  %v1781 = vunpack.c.h.b16 %v1245
  %v1782 = vunpack.c.l.b16 %v1246
  %v1783 = vunpack.c.h.b16 %v1246
  %v1784 = vunpack.c.l.b16 %v1247
  %v1785 = vunpack.c.h.b16 %v1247
  %v1786 = vunpack.c.l.b16 %v1248
  %v1787 = vunpack.c.h.b16 %v1248
  %v1788 = vunpack.c.l.b16 %v1249
  %v1789 = vunpack.c.h.b16 %v1249
  %v1790 = vunpack.c.l.b16 %v1250
  %v1791 = vunpack.c.h.b16 %v1250
  %v1792 = vunpack.c.l.b16 %v1251
  %v1793 = vunpack.c.h.b16 %v1251
  %v1794 = vunpack.c.l.b16 %v1252
  %v1795 = vunpack.c.h.b16 %v1252
  %v1796 = vunpack.c.l.b16 %v1253
  %v1797 = vunpack.c.h.b16 %v1253
  %v1798 = vunpack.c.l.b16 %v1254
  %v1799 = vunpack.c.h.b16 %v1254
  %v1800 = vunpack.c.l.b16 %v1255
  %v1801 = vunpack.c.h.b16 %v1255
  %v1802 = vunpack.c.l.b16 %v1256
  %v1803 = vunpack.c.h.b16 %v1256
  %v1804 = vunpack.c.l.b16 %v1257
  %v1805 = vunpack.c.h.b16 %v1257
  %v1806 = vunpack.c.l.b16 %v1258
  %v1807 = vunpack.c.h.b16 %v1258
  %v1808 = vunpack.c.l.b16 %v1259
  %v1809 = vunpack.c.h.b16 %v1259
  %v1810 = vunpack.c.l.b16 %v1260
  %v1811 = vunpack.c.h.b16 %v1260
  %v1812 = vunpack.c.l.b16 %v1261
  %v1813 = vunpack.c.h.b16 %v1261
  %v1814 = vunpack.c.l.b16 %v1262
  %v1815 = vunpack.c.h.b16 %v1262
  %v1816 = vunpack.c.l.b16 %v1263
  %v1817 = vunpack.c.h.b16 %v1263
  %v1818 = vunpack.c.l.b16 %v1264
  %v1819 = vunpack.c.h.b16 %v1264
  %v1820 = vunpack.c.l.b16 %v1265
  %v1821 = vunpack.c.h.b16 %v1265
  %v1822 = vunpack.c.l.b16 %v1266
  %v1823 = vunpack.c.h.b16 %v1266
  %v1824 = vunpack.c.l.b16 %v1267
  %v1825 = vunpack.c.h.b16 %v1267
  %v1826 = vunpack.c.l.b16 %v1268
  %v1827 = vunpack.c.h.b16 %v1268
  %v1828 = vunpack.c.l.b16 %v1269
  %v1829 = vunpack.c.h.b16 %v1269
  %v1830 = vunpack.c.l.b16 %v1270
  %v1831 = vunpack.c.h.b16 %v1270
  %v1832 = vunpack.c.l.b16 %v1271
  %v1833 = vunpack.c.h.b16 %v1271
  %v1834 = vunpack.c.l.b16 %v1272
  %v1835 = vunpack.c.h.b16 %v1272
  %v1836 = vunpack.c.l.b16 %v1273
  %v1837 = vunpack.c.h.b16 %v1273
  %v1838 = vunpack.c.l.b16 %v1274
  %v1839 = vunpack.c.h.b16 %v1274
  %v1840 = vunpack.c.l.b16 %v1275
  %v1841 = vunpack.c.h.b16 %v1275
  %v1842 = vunpack.c.l.b16 %v1276
  %v1843 = vunpack.c.h.b16 %v1276
  %v1844 = vunpack.c.l.b16 %v1277
  %v1845 = vunpack.c.h.b16 %v1277
  %v1846 = vunpack.c.l.b16 %v1278
  %v1847 = vunpack.c.h.b16 %v1278
  %v1848 = vunpack.c.l.b16 %v1279
  %v1849 = vunpack.c.h.b16 %v1279
  %v1850 = vunpack.c.l.b16 %v1280
  %v1851 = vunpack.c.h.b16 %v1280
  %v1852 = vunpack.c.l.b16 %v1281
  %v1853 = vunpack.c.h.b16 %v1281
  %v1854 = vunpack.c.l.b16 %v1282
  %v1855 = vunpack.c.h.b16 %v1282
  %v1856 = vunpack.c.l.b16 %v1283
  %v1857 = vunpack.c.h.b16 %v1283
  %v1858 = vunpack.c.l.b16 %v1284
  %v1859 = vunpack.c.h.b16 %v1284
  %v1860 = vunpack.c.l.b16 %v1285
  %v1861 = vunpack.c.h.b16 %v1285
  %v1862 = vunpack.c.l.b16 %v1286
  %v1863 = vunpack.c.h.b16 %v1286
  %v1864 = vunpack.c.l.b16 %v1287
  %v1865 = vunpack.c.h.b16 %v1287
  %v1866 = vunpack.c.l.b16 %v1288
  %v1867 = vunpack.c.h.b16 %v1288
  %v1868 = vunpack.c.l.b16 %v1289
  %v1869 = vunpack.c.h.b16 %v1289
  %v1870 = vunpack.c.l.b16 %v1290
  %v1871 = vunpack.c.h.b16 %v1290
  %v1872 = vunpack.c.l.b16 %v1291
  %v1873 = vunpack.c.h.b16 %v1291
  %v1874 = vunpack.c.l.b16 %v1292
  %v1875 = vunpack.c.h.b16 %v1292
  %v1876 = vunpack.c.l.b16 %v1293
  %v1877 = vunpack.c.h.b16 %v1293
  %v1878 = vunpack.c.l.b16 %v1294
  %v1879 = vunpack.c.h.b16 %v1294
  %v1880 = vunpack.c.l.b16 %v1295
  %v1881 = vunpack.c.h.b16 %v1295
  %v1882 = vunpack.c.l.b16 %v1296
  %v1883 = vunpack.c.h.b16 %v1296
  %v1884 = vunpack.c.l.b16 %v1297
  %v1885 = vunpack.c.h.b16 %v1297
  %v1886 = vunpack.c.l.b16 %v1298
  %v1887 = vunpack.c.h.b16 %v1298
  %v1888 = vunpack.c.l.b16 %v1299
  %v1889 = vunpack.c.h.b16 %v1299
  %v1890 = vunpack.c.l.b16 %v1300
  %v1891 = vunpack.c.h.b16 %v1300
  %v1892 = vunpack.c.l.b16 %v1301
  %v1893 = vunpack.c.h.b16 %v1301
  %v1894 = vunpack.c.l.b16 %v1302
  %v1895 = vunpack.c.h.b16 %v1302
  %v1896 = vunpack.c.l.b16 %v1303
  %v1897 = vunpack.c.h.b16 %v1303
  %v1898 = vunpack.c.l.b16 %v1304
  %v1899 = vunpack.c.h.b16 %v1304
  %v1900 = vunpack.c.l.b16 %v1305
  %v1901 = vunpack.c.h.b16 %v1305
  %v1902 = vunpack.c.l.b16 %v1306
  %v1903 = vunpack.c.h.b16 %v1306
  %v1904 = vunpack.c.l.b16 %v1307
  %v1905 = vunpack.c.h.b16 %v1307
  %v1906 = vunpack.c.l.b16 %v1308
  %v1907 = vunpack.c.h.b16 %v1308
  %v1908 = vunpack.c.l.b16 %v1309
  %v1909 = vunpack.c.h.b16 %v1309
  %v1910 = vunpack.c.l.b16 %v1310
  %v1911 = vunpack.c.h.b16 %v1310
  %v1912 = vunpack.c.l.b16 %v1311
  %v1913 = vunpack.c.h.b16 %v1311
  %v1914 = vunpack.c.l.b16 %v1312
  %v1915 = vunpack.c.h.b16 %v1312
  %v1916 = vunpack.c.l.b16 %v1313
  %v1917 = vunpack.c.h.b16 %v1313
  %v1918 = vunpack.c.l.b16 %v1314
  %v1919 = vunpack.c.h.b16 %v1314
  %v1920 = vunpack.c.l.b16 %v1315
  %v1921 = vunpack.c.h.b16 %v1315
  %v1922 = vunpack.c.l.b16 %v1316
  %v1923 = vunpack.c.h.b16 %v1316
  %v1924 = vunpack.c.l.b16 %v1317
  %v1925 = vunpack.c.h.b16 %v1317
  %v1926 = vunpack.c.l.b16 %v1318
  %v1927 = vunpack.c.h.b16 %v1318
  %v1928 = vunpack.c.l.b16 %v1319
  %v1929 = vunpack.c.h.b16 %v1319
  %v1930 = vunpack.c.l.b16 %v1320
  %v1931 = vunpack.c.h.b16 %v1320
  %v1932 = vunpack.c.l.b16 %v1321
  %v1933 = vunpack.c.h.b16 %v1321
  %v1934 = vunpack.c.l.b16 %v1322
  %v1935 = vunpack.c.h.b16 %v1322
  %v1936 = vunpack.c.l.b16 %v1323
  %v1937 = vunpack.c.h.b16 %v1323
  %v1938 = vunpack.c.l.b16 %v1324
  %v1939 = vunpack.c.h.b16 %v1324
  %v1940 = vunpack.c.l.b16 %v1325
  %v1941 = vunpack.c.h.b16 %v1325
  %v1942 = vunpack.c.l.b16 %v1326
  %v1943 = vunpack.c.h.b16 %v1326
  %v1944 = vunpack.c.l.b16 %v1327
  %v1945 = vunpack.c.h.b16 %v1327
  %v1946 = vunpack.c.l.b16 %v1328
  %v1947 = vunpack.c.h.b16 %v1328
  %v1948 = vunpack.c.l.b16 %v1329
  %v1949 = vunpack.c.h.b16 %v1329
  %v1950 = vunpack.c.l.b16 %v1330
  %v1951 = vunpack.c.h.b16 %v1330
  %v1952 = vunpack.c.l.b16 %v1331
  %v1953 = vunpack.c.h.b16 %v1331
  %v1954 = vunpack.c.l.b16 %v1332
  %v1955 = vunpack.c.h.b16 %v1332
  %v1956 = vunpack.c.l.b16 %v1333
  %v1957 = vunpack.c.h.b16 %v1333
  %v1958 = vunpack.c.l.b16 %v1334
  %v1959 = vunpack.c.h.b16 %v1334
  %v1960 = vunpack.c.l.b16 %v1335
  %v1961 = vunpack.c.h.b16 %v1335
  %v1962 = vunpack.c.l.b16 %v1336
  %v1963 = vunpack.c.h.b16 %v1336
  %v1964 = vunpack.c.l.b16 %v1337
  %v1965 = vunpack.c.h.b16 %v1337
  %v1966 = vunpack.c.l.b16 %v1338
  %v1967 = vunpack.c.h.b16 %v1338
  %v1968 = vunpack.c.l.b16 %v1339
  %v1969 = vunpack.c.h.b16 %v1339
  %v1970 = vunpack.c.l.b16 %v1340
  %v1971 = vunpack.c.h.b16 %v1340
  %v1972 = vunpack.c.l.b16 %v1341
  %v1973 = vunpack.c.h.b16 %v1341
  %v1974 = vunpack.c.l.b16 %v1342
  %v1975 = vunpack.c.h.b16 %v1342
  %v1976 = vunpack.c.l.b16 %v1343
  %v1977 = vunpack.c.h.b16 %v1343
  %v1978 = vunpack.c.l.b16 %v1344
  %v1979 = vunpack.c.h.b16 %v1344
  %v1980 = vunpack.c.l.b16 %v1345
  %v1981 = vunpack.c.h.b16 %v1345
  %v1982 = vunpack.c.l.b16 %v1346
  %v1983 = vunpack.c.h.b16 %v1346
  %v1984 = vunpack.c.l.b16 %v1347
  %v1985 = vunpack.c.h.b16 %v1347
  %v1986 = vunpack.c.l.b16 %v1348
  %v1987 = vunpack.c.h.b16 %v1348
  %v1988 = vunpack.c.l.b16 %v1349
  %v1989 = vunpack.c.h.b16 %v1349
  %v1990 = vunpack.c.l.b16 %v1350
  %v1991 = vunpack.c.h.b16 %v1350
  %v1992 = vunpack.c.l.b16 %v1351
  %v1993 = vunpack.c.h.b16 %v1351
  %v1994 = vunpack.c.l.b16 %v1352
  %v1995 = vunpack.c.h.b16 %v1352
  %v1996 = vunpack.c.l.b16 %v1353
  %v1997 = vunpack.c.h.b16 %v1353
  %v1998 = vunpack.c.l.b16 %v1354
  %v1999 = vunpack.c.h.b16 %v1354
  %v2000 = vunpack.c.l.b16 %v1355
  %v2001 = vunpack.c.h.b16 %v1355
  %v2002 = vunpack.c.l.b16 %v1356
  %v2003 = vunpack.c.h.b16 %v1356
  %v2004 = vunpack.c.l.b16 %v1357
  %v2005 = vunpack.c.h.b16 %v1357
  %v2006 = vunpack.c.l.b16 %v1358
  %v2007 = vunpack.c.h.b16 %v1358
  %v2008 = vunpack.c.l.b16 %v1359
  %v2009 = vunpack.c.h.b16 %v1359
  %v2010 = vunpack.c.l.b16 %v1360
  %v2011 = vunpack.c.h.b16 %v1360
  %v2012 = vunpack.c.l.b16 %v1361
  %v2013 = vunpack.c.h.b16 %v1361
  %v2014 = vunpack.c.l.b16 %v1362
  %v2015 = vunpack.c.h.b16 %v1362
  %v2016 = vunpack.c.l.b16 %v1363
  %v2017 = vunpack.c.h.b16 %v1363
  %v2018 = vunpack.c.l.b16 %v1364
  %v2019 = vunpack.c.h.b16 %v1364
  %v2020 = vunpack.c.l.b16 %v1365
  %v2021 = vunpack.c.h.b16 %v1365
  %v2022 = vunpack.c.l.b16 %v1366
  %v2023 = vunpack.c.h.b16 %v1366
  %v2024 = vunpack.c.l.b16 %v1367
  %v2025 = vunpack.c.h.b16 %v1367
  %v2026 = vunpack.c.l.b16 %v1368
  %v2027 = vunpack.c.h.b16 %v1368
  %v2028 = vunpack.c.l.b16 %v1369
  %v2029 = vunpack.c.h.b16 %v1369
  %v2030 = vunpack.c.l.b16 %v1370
  %v2031 = vunpack.c.h.b16 %v1370
  %v2032 = vunpack.c.l.b16 %v1371
  %v2033 = vunpack.c.h.b16 %v1371
  %v2034 = vunpack.c.l.b16 %v1372
  %v2035 = vunpack.c.h.b16 %v1372
  %v2036 = vunpack.c.l.b16 %v1373
  %v2037 = vunpack.c.h.b16 %v1373
  %v2038 = vunpack.c.l.b16 %v1374
  %v2039 = vunpack.c.h.b16 %v1374
  %v2040 = vunpack.c.l.b16 %v1375
  %v2041 = vunpack.c.h.b16 %v1375
  %v2042 = vunpack.c.l.b16 %v1376
  %v2043 = vunpack.c.h.b16 %v1376
  %v2044 = vunpack.c.l.b16 %v1377
  %v2045 = vunpack.c.h.b16 %v1377
  %v2046 = vunpack.c.l.b16 %v1378
  %v2047 = vunpack.c.h.b16 %v1378
  %v2048 = vunpack.c.l.b16 %v1379
  %v2049 = vunpack.c.h.b16 %v1379
  %v2050 = vunpack.c.l.b16 %v1380
  %v2051 = vunpack.c.h.b16 %v1380
  %v2052 = vunpack.c.l.b16 %v1381
  %v2053 = vunpack.c.h.b16 %v1381
  %v2054 = vunpack.c.l.b16 %v1382
  %v2055 = vunpack.c.h.b16 %v1382
  %v2056 = vunpack.c.l.b16 %v1383
  %v2057 = vunpack.c.h.b16 %v1383
  %v2058 = vunpack.c.l.b16 %v1384
  %v2059 = vunpack.c.h.b16 %v1384
  %v2060 = vunpack.c.l.b16 %v1385
  %v2061 = vunpack.c.h.b16 %v1385
  %v2062 = vunpack.c.l.b16 %v1386
  %v2063 = vunpack.c.h.b16 %v1386
  %v2064 = vunpack.c.l.b16 %v1387
  %v2065 = vunpack.c.h.b16 %v1387
  %v2066 = vunpack.c.l.b16 %v1388
  %v2067 = vunpack.c.h.b16 %v1388
  %v2068 = vunpack.c.l.b16 %v1389
  %v2069 = vunpack.c.h.b16 %v1389
  %v2070 = vunpack.c.l.b16 %v1390
  %v2071 = vunpack.c.h.b16 %v1390
  %v2072 = vunpack.c.l.b16 %v1391
  %v2073 = vunpack.c.h.b16 %v1391
  %v2074 = vunpack.c.l.b16 %v1392
  %v2075 = vunpack.c.h.b16 %v1392
  %v2076 = vunpack.c.l.b16 %v1393
  %v2077 = vunpack.c.h.b16 %v1393
  %v2078 = vunpack.c.l.b16 %v1394
  %v2079 = vunpack.c.h.b16 %v1394
  %v2080 = vunpack.c.l.b16 %v1395
  %v2081 = vunpack.c.h.b16 %v1395
  %v2082 = vunpack.c.l.b16 %v1396
  %v2083 = vunpack.c.h.b16 %v1396
  %v2084 = vunpack.c.l.b16 %v1397
  %v2085 = vunpack.c.h.b16 %v1397
  %v2086 = vunpack.c.l.b16 %v1398
  %v2087 = vunpack.c.h.b16 %v1398
  %v2088 = vunpack.c.l.b16 %v1399
  %v2089 = vunpack.c.h.b16 %v1399
  %v2090 = vunpack.c.l.b16 %v1400
  %v2091 = vunpack.c.h.b16 %v1400
  %v2092 = vunpack.c.l.b16 %v1401
  %v2093 = vunpack.c.h.b16 %v1401
  %v2094 = vunpack.c.l.b16 %v1402
  %v2095 = vunpack.c.h.b16 %v1402
  %v2096 = vunpack.c.l.b16 %v1403
  %v2097 = vunpack.c.h.b16 %v1403
  %v2098 = vunpack.c.l.b16 %v1404
  %v2099 = vunpack.c.h.b16 %v1404
  %v2100 = vunpack.c.l.b16 %v1405
  %v2101 = vunpack.c.h.b16 %v1405
  %v2102 = vunpack.c.l.b16 %v1406
  %v2103 = vunpack.c.h.b16 %v1406
  %v2104 = vunpack.c.l.b16 %v1407
  %v2105 = vunpack.c.h.b16 %v1407
  %v2106 = vunpack.c.l.b16 %v1408
  %v2107 = vunpack.c.h.b16 %v1408
  %v2108 = vunpack.c.l.b16 %v1409
  %v2109 = vunpack.c.h.b16 %v1409
  %v2110 = vunpack.c.l.b16 %v1410
  %v2111 = vunpack.c.h.b16 %v1410
  %v2112 = vunpack.c.l.b16 %v1411
  %v2113 = vunpack.c.h.b16 %v1411
  %v2114 = vunpack.c.l.b16 %v1412
  %v2115 = vunpack.c.h.b16 %v1412
  %v2116 = vunpack.c.l.b16 %v1413
  %v2117 = vunpack.c.h.b16 %v1413
  %v2118 = vunpack.c.l.b16 %v1414
  %v2119 = vunpack.c.h.b16 %v1414
  %v2120 = vunpack.c.l.b16 %v1415
  %v2121 = vunpack.c.h.b16 %v1415
  %v2122 = vunpack.c.l.b16 %v1416
  %v2123 = vunpack.c.h.b16 %v1416
  %v2124 = vunpack.c.l.b16 %v1417
  %v2125 = vunpack.c.h.b16 %v1417
  %v2126 = vunpack.c.l.b16 %v1418
  %v2127 = vunpack.c.h.b16 %v1418
  %v2128 = vunpack.c.l.b16 %v1419
  %v2129 = vunpack.c.h.b16 %v1419
  %v2130 = vunpack.c.l.b16 %v1420
  %v2131 = vunpack.c.h.b16 %v1420
  %v2132 = vunpack.c.l.b16 %v1421
  %v2133 = vunpack.c.h.b16 %v1421
  %v2134 = vunpack.c.l.b16 %v1422
  %v2135 = vunpack.c.h.b16 %v1422
  %v2136 = vunpack.c.l.b16 %v1423
  %v2137 = vunpack.c.h.b16 %v1423
  %v2138 = vunpack.c.l.b16 %v1424
  %v2139 = vunpack.c.h.b16 %v1424
  %v2140 = vunpack.c.l.b16 %v1425
  %v2141 = vunpack.c.h.b16 %v1425
  %v2142 = vunpack.c.l.b16 %v1426
  %v2143 = vunpack.c.h.b16 %v1426
  %v2144 = vunpack.c.l.b16 %v1427
  %v2145 = vunpack.c.h.b16 %v1427
  %v2146 = vunpack.c.l.b16 %v1428
  %v2147 = vunpack.c.h.b16 %v1428
  %v2148 = vunpack.c.l.b16 %v1429
  %v2149 = vunpack.c.h.b16 %v1429
  %v2150 = vunpack.c.l.b16 %v1430
  %v2151 = vunpack.c.h.b16 %v1430
  %v2152 = vunpack.c.l.b16 %v1431
  %v2153 = vunpack.c.h.b16 %v1431
  %v2154 = vunpack.c.l.b16 %v1432
  %v2155 = vunpack.c.h.b16 %v1432
  %v2156 = vunpack.c.l.b16 %v1433
  %v2157 = vunpack.c.h.b16 %v1433
  %v2158 = vunpack.c.l.b16 %v1434
  %v2159 = vunpack.c.h.b16 %v1434
  %v2160 = vunpack.c.l.b16 %v1435
  %v2161 = vunpack.c.h.b16 %v1435
  %v2162 = vunpack.c.l.b16 %v1436
  %v2163 = vunpack.c.h.b16 %v1436
  %v2164 = vunpack.c.l.b16 %v1437
  %v2165 = vunpack.c.h.b16 %v1437
  %v2166 = vunpack.c.l.b16 %v1438
  %v2167 = vunpack.c.h.b16 %v1438
  %v2168 = vunpack.c.l.b16 %v1439
  %v2169 = vunpack.c.h.b16 %v1439
  %v2170 = vunpack.c.l.b16 %v1440
  %v2171 = vunpack.c.h.b16 %v1440
  %v2172 = vunpack.c.l.b16 %v1441
  %v2173 = vunpack.c.h.b16 %v1441
  %v2174 = vunpack.c.l.b16 %v1442
  %v2175 = vunpack.c.h.b16 %v1442
  %v2176 = vunpack.c.l.b16 %v1443
  %v2177 = vunpack.c.h.b16 %v1443
  %v2178 = vunpack.c.l.b16 %v1444
  %v2179 = vunpack.c.h.b16 %v1444
  %v2180 = vunpack.c.l.b16 %v1445
  %v2181 = vunpack.c.h.b16 %v1445
  %v2182 = vunpack.c.l.b16 %v1446
  %v2183 = vunpack.c.h.b16 %v1446
  %v2184 = vunpack.c.l.b16 %v1447
  %v2185 = vunpack.c.h.b16 %v1447
  %v2186 = vunpack.c.l.b16 %v1448
  %v2187 = vunpack.c.h.b16 %v1448
  %v2188 = vunpack.c.l.b16 %v1449
  %v2189 = vunpack.c.h.b16 %v1449
  %v2190 = vunpack.c.l.b16 %v1450
  %v2191 = vunpack.c.h.b16 %v1450
  %v2192 = vunpack.c.l.b16 %v1451
  %v2193 = vunpack.c.h.b16 %v1451
  %v2194 = vunpack.c.l.b16 %v1452
  %v2195 = vunpack.c.h.b16 %v1452
  %v2196 = vunpack.c.l.b16 %v1453
  %v2197 = vunpack.c.h.b16 %v1453
  %v2198 = vunpack.c.l.b16 %v1454
  %v2199 = vunpack.c.h.b16 %v1454
  %v2200 = vunpack.c.l.b16 %v1455
  %v2201 = vunpack.c.h.b16 %v1455
  %v2202 = vunpack.c.l.b16 %v1456
  %v2203 = vunpack.c.h.b16 %v1456
  %v2204 = vunpack.c.l.b16 %v1457
  %v2205 = vunpack.c.h.b16 %v1457
  %v2206 = vunpack.c.l.b16 %v1458
  %v2207 = vunpack.c.h.b16 %v1458
  %v2208 = vunpack.c.l.b16 %v1459
  %v2209 = vunpack.c.h.b16 %v1459
  %v2210 = vunpack.c.l.b16 %v1460
  %v2211 = vunpack.c.h.b16 %v1460
  %v2212 = vunpack.c.l.b16 %v1461
  %v2213 = vunpack.c.h.b16 %v1461
  %v2214 = vunpack.c.l.b16 %v1462
  %v2215 = vunpack.c.h.b16 %v1462
  %v2216 = vunpack.c.l.b16 %v1463
  %v2217 = vunpack.c.h.b16 %v1463
  %v2218 = vunpack.c.l.b16 %v1464
  %v2219 = vunpack.c.h.b16 %v1464
  %v2220 = vunpack.c.l.b16 %v1465
  %v2221 = vunpack.c.h.b16 %v1465
  %v2222 = vunpack.c.l.b16 %v1466
  %v2223 = vunpack.c.h.b16 %v1466
  %v2224 = vunpack.c.l.b16 %v1467
  %v2225 = vunpack.c.h.b16 %v1467
  %v2226 = vunpack.c.l.b16 %v1468
  %v2227 = vunpack.c.h.b16 %v1468
  %v2228 = vunpack.c.l.b16 %v1469
  %v2229 = vunpack.c.h.b16 %v1469
  %v2230 = vunpack.c.l.b16 %v1470
  %v2231 = vunpack.c.h.b16 %v1470
  %v2232 = vunpack.c.l.b16 %v1471
  %v2233 = vunpack.c.h.b16 %v1471
  %v2234 = vunpack.c.l.b16 %v1472
  %v2235 = vunpack.c.h.b16 %v1472
  %v2236 = vunpack.c.l.b16 %v1473
  %v2237 = vunpack.c.h.b16 %v1473
  %v2238 = vunpack.c.l.b16 %v1474
  %v2239 = vunpack.c.h.b16 %v1474
  %v2240 = vunpack.c.l.b16 %v1475
  %v2241 = vunpack.c.h.b16 %v1475
  %v2242 = vunpack.c.l.b16 %v1476
  %v2243 = vunpack.c.h.b16 %v1476
  %v2244 = vunpack.c.l.b16 %v1477
  %v2245 = vunpack.c.h.b16 %v1477
  %v2246 = vunpack.c.l.b16 %v1478
  %v2247 = vunpack.c.h.b16 %v1478
  %v2248 = vunpack.c.l.b16 %v1479
  %v2249 = vunpack.c.h.b16 %v1479
  %v2250 = vunpack.c.l.b16 %v1480
  %v2251 = vunpack.c.h.b16 %v1480
  %v2252 = vunpack.c.l.b16 %v1481
  %v2253 = vunpack.c.h.b16 %v1481
  %v2254 = vunpack.c.l.b16 %v1482
  %v2255 = vunpack.c.h.b16 %v1482
  %v2256 = vunpack.c.l.b16 %v1483
  %v2257 = vunpack.c.h.b16 %v1483
  %v2258 = vunpack.c.l.b16 %v1484
  %v2259 = vunpack.c.h.b16 %v1484
  %v2260 = vunpack.c.l.b16 %v1485
  %v2261 = vunpack.c.h.b16 %v1485
  %v2262 = vunpack.c.l.b16 %v1486
  %v2263 = vunpack.c.h.b16 %v1486
  %v2264 = vunpack.c.l.b16 %v1487
  %v2265 = vunpack.c.h.b16 %v1487
  %v2266 = vunpack.c.l.b16 %v1488
  %v2267 = vunpack.c.h.b16 %v1488
  %v2268 = vunpack.c.l.b16 %v1489
  %v2269 = vunpack.c.h.b16 %v1489
  %v2270 = vpack.c.b16 %v1760, %v1758
  %v2271 = vpack.c.b16 %v1761, %v1759
  %v2272 = vpack.c.b16 %v1764, %v1762
  %v2273 = vpack.c.b16 %v1765, %v1763
  %v2274 = vpack.c.b16 %v1768, %v1766
  %v2275 = vpack.c.b16 %v1769, %v1767
  %v2276 = vpack.c.b16 %v1772, %v1770
  %v2277 = vpack.c.b16 %v1773, %v1771
  %v2278 = vpack.c.b16 %v1776, %v1774
  %v2279 = vpack.c.b16 %v1777, %v1775
  %v2280 = vpack.c.b16 %v1780, %v1778
  %v2281 = vpack.c.b16 %v1781, %v1779
  %v2282 = vpack.c.b16 %v1784, %v1782
  %v2283 = vpack.c.b16 %v1785, %v1783
  %v2284 = vpack.c.b16 %v1788, %v1786
  %v2285 = vpack.c.b16 %v1789, %v1787
  %v2286 = vpack.c.b16 %v1792, %v1790
  %v2287 = vpack.c.b16 %v1793, %v1791
  %v2288 = vpack.c.b16 %v1796, %v1794
  %v2289 = vpack.c.b16 %v1797, %v1795
  %v2290 = vpack.c.b16 %v1800, %v1798
  %v2291 = vpack.c.b16 %v1801, %v1799
  %v2292 = vpack.c.b16 %v1804, %v1802
  %v2293 = vpack.c.b16 %v1805, %v1803
  %v2294 = vpack.c.b16 %v1808, %v1806
  %v2295 = vpack.c.b16 %v1809, %v1807
  %v2296 = vpack.c.b16 %v1812, %v1810
  %v2297 = vpack.c.b16 %v1813, %v1811
  %v2298 = vpack.c.b16 %v1816, %v1814
  %v2299 = vpack.c.b16 %v1817, %v1815
  %v2300 = vpack.c.b16 %v1820, %v1818
  %v2301 = vpack.c.b16 %v1821, %v1819
  %v2302 = vpack.c.b16 %v1824, %v1822
  %v2303 = vpack.c.b16 %v1825, %v1823
  %v2304 = vpack.c.b16 %v1828, %v1826
  %v2305 = vpack.c.b16 %v1829, %v1827
  %v2306 = vpack.c.b16 %v1832, %v1830
  %v2307 = vpack.c.b16 %v1833, %v1831
  %v2308 = vpack.c.b16 %v1836, %v1834
  %v2309 = vpack.c.b16 %v1837, %v1835
  %v2310 = vpack.c.b16 %v1840, %v1838
  %v2311 = vpack.c.b16 %v1841, %v1839
  %v2312 = vpack.c.b16 %v1844, %v1842
  %v2313 = vpack.c.b16 %v1845, %v1843
  %v2314 = vpack.c.b16 %v1848, %v1846
  %v2315 = vpack.c.b16 %v1849, %v1847
  %v2316 = vpack.c.b16 %v1852, %v1850
  %v2317 = vpack.c.b16 %v1853, %v1851
  %v2318 = vpack.c.b16 %v1856, %v1854
  %v2319 = vpack.c.b16 %v1857, %v1855
  %v2320 = vpack.c.b16 %v1860, %v1858
  %v2321 = vpack.c.b16 %v1861, %v1859
  %v2322 = vpack.c.b16 %v1864, %v1862
  %v2323 = vpack.c.b16 %v1865, %v1863
  %v2324 = vpack.c.b16 %v1868, %v1866
  %v2325 = vpack.c.b16 %v1869, %v1867
  %v2326 = vpack.c.b16 %v1872, %v1870
  %v2327 = vpack.c.b16 %v1873, %v1871
  %v2328 = vpack.c.b16 %v1876, %v1874
  %v2329 = vpack.c.b16 %v1877, %v1875
  %v2330 = vpack.c.b16 %v1880, %v1878
  %v2331 = vpack.c.b16 %v1881, %v1879
  %v2332 = vpack.c.b16 %v1884, %v1882
  %v2333 = vpack.c.b16 %v1885, %v1883
  %v2334 = vpack.c.b16 %v1888, %v1886
  %v2335 = vpack.c.b16 %v1889, %v1887
  %v2336 = vpack.c.b16 %v1892, %v1890
  %v2337 = vpack.c.b16 %v1893, %v1891
  %v2338 = vpack.c.b16 %v1896, %v1894
  %v2339 = vpack.c.b16 %v1897, %v1895
  %v2340 = vpack.c.b16 %v1900, %v1898
  %v2341 = vpack.c.b16 %v1901, %v1899
  %v2342 = vpack.c.b16 %v1904, %v1902
  %v2343 = vpack.c.b16 %v1905, %v1903
  %v2344 = vpack.c.b16 %v1908, %v1906
  %v2345 = vpack.c.b16 %v1909, %v1907
  %v2346 = vpack.c.b16 %v1912, %v1910
  %v2347 = vpack.c.b16 %v1913, %v1911
  %v2348 = vpack.c.b16 %v1916, %v1914
  %v2349 = vpack.c.b16 %v1917, %v1915
  %v2350 = vpack.c.b16 %v1920, %v1918
  %v2351 = vpack.c.b16 %v1921, %v1919
  %v2352 = vpack.c.b16 %v1924, %v1922
  %v2353 = vpack.c.b16 %v1925, %v1923
  %v2354 = vpack.c.b16 %v1928, %v1926
  %v2355 = vpack.c.b16 %v1929, %v1927
  %v2356 = vpack.c.b16 %v1932, %v1930
  %v2357 = vpack.c.b16 %v1933, %v1931
  %v2358 = vpack.c.b16 %v1936, %v1934
  %v2359 = vpack.c.b16 %v1937, %v1935
  %v2360 = vpack.c.b16 %v1940, %v1938
  %v2361 = vpack.c.b16 %v1941, %v1939
  %v2362 = vpack.c.b16 %v1944, %v1942
  %v2363 = vpack.c.b16 %v1945, %v1943
  %v2364 = vpack.c.b16 %v1948, %v1946
  %v2365 = vpack.c.b16 %v1949, %v1947
  %v2366 = vpack.c.b16 %v1952, %v1950
  %v2367 = vpack.c.b16 %v1953, %v1951
  %v2368 = vpack.c.b16 %v1956, %v1954
  %v2369 = vpack.c.b16 %v1957, %v1955
  %v2370 = vpack.c.b16 %v1960, %v1958
  %v2371 = vpack.c.b16 %v1961, %v1959
  %v2372 = vpack.c.b16 %v1964, %v1962
  %v2373 = vpack.c.b16 %v1965, %v1963
  %v2374 = vpack.c.b16 %v1968, %v1966
  %v2375 = vpack.c.b16 %v1969, %v1967
  %v2376 = vpack.c.b16 %v1972, %v1970
  %v2377 = vpack.c.b16 %v1973, %v1971
  %v2378 = vpack.c.b16 %v1976, %v1974
  %v2379 = vpack.c.b16 %v1977, %v1975
  %v2380 = vpack.c.b16 %v1980, %v1978
  %v2381 = vpack.c.b16 %v1981, %v1979
  %v2382 = vpack.c.b16 %v1984, %v1982
  %v2383 = vpack.c.b16 %v1985, %v1983
  %v2384 = vpack.c.b16 %v1988, %v1986
  %v2385 = vpack.c.b16 %v1989, %v1987
  %v2386 = vpack.c.b16 %v1992, %v1990
  %v2387 = vpack.c.b16 %v1993, %v1991
  %v2388 = vpack.c.b16 %v1996, %v1994
  %v2389 = vpack.c.b16 %v1997, %v1995
  %v2390 = vpack.c.b16 %v2000, %v1998
  %v2391 = vpack.c.b16 %v2001, %v1999
  %v2392 = vpack.c.b16 %v2004, %v2002
  %v2393 = vpack.c.b16 %v2005, %v2003
  %v2394 = vpack.c.b16 %v2008, %v2006
  %v2395 = vpack.c.b16 %v2009, %v2007
  %v2396 = vpack.c.b16 %v2012, %v2010
  %v2397 = vpack.c.b16 %v2013, %v2011
  %v2398 = vpack.c.b16 %v2016, %v2014
  %v2399 = vpack.c.b16 %v2017, %v2015
  %v2400 = vpack.c.b16 %v2020, %v2018
  %v2401 = vpack.c.b16 %v2021, %v2019
  %v2402 = vpack.c.b16 %v2024, %v2022
  %v2403 = vpack.c.b16 %v2025, %v2023
  %v2404 = vpack.c.b16 %v2028, %v2026
  %v2405 = vpack.c.b16 %v2029, %v2027
  %v2406 = vpack.c.b16 %v2032, %v2030
  %v2407 = vpack.c.b16 %v2033, %v2031
  %v2408 = vpack.c.b16 %v2036, %v2034
  %v2409 = vpack.c.b16 %v2037, %v2035
  %v2410 = vpack.c.b16 %v2040, %v2038
  %v2411 = vpack.c.b16 %v2041, %v2039
  %v2412 = vpack.c.b16 %v2044, %v2042
  %v2413 = vpack.c.b16 %v2045, %v2043
  %v2414 = vpack.c.b16 %v2048, %v2046
  %v2415 = vpack.c.b16 %v2049, %v2047
  %v2416 = vpack.c.b16 %v2052, %v2050
  %v2417 = vpack.c.b16 %v2053, %v2051
  %v2418 = vpack.c.b16 %v2056, %v2054
  %v2419 = vpack.c.b16 %v2057, %v2055
  %v2420 = vpack.c.b16 %v2060, %v2058
  %v2421 = vpack.c.b16 %v2061, %v2059
  %v2422 = vpack.c.b16 %v2064, %v2062
  %v2423 = vpack.c.b16 %v2065, %v2063
  %v2424 = vpack.c.b16 %v2068, %v2066
  %v2425 = vpack.c.b16 %v2069, %v2067
  %v2426 = vpack.c.b16 %v2072, %v2070
  %v2427 = vpack.c.b16 %v2073, %v2071
  %v2428 = vpack.c.b16 %v2076, %v2074
  %v2429 = vpack.c.b16 %v2077, %v2075
  %v2430 = vpack.c.b16 %v2080, %v2078
  %v2431 = vpack.c.b16 %v2081, %v2079
  %v2432 = vpack.c.b16 %v2084, %v2082
  %v2433 = vpack.c.b16 %v2085, %v2083
  %v2434 = vpack.c.b16 %v2088, %v2086
  %v2435 = vpack.c.b16 %v2089, %v2087
  %v2436 = vpack.c.b16 %v2092, %v2090
  %v2437 = vpack.c.b16 %v2093, %v2091
  %v2438 = vpack.c.b16 %v2096, %v2094
  %v2439 = vpack.c.b16 %v2097, %v2095
  %v2440 = vpack.c.b16 %v2100, %v2098
  %v2441 = vpack.c.b16 %v2101, %v2099
  %v2442 = vpack.c.b16 %v2104, %v2102
  %v2443 = vpack.c.b16 %v2105, %v2103
  %v2444 = vpack.c.b16 %v2108, %v2106
  %v2445 = vpack.c.b16 %v2109, %v2107
  %v2446 = vpack.c.b16 %v2112, %v2110
  %v2447 = vpack.c.b16 %v2113, %v2111
  %v2448 = vpack.c.b16 %v2116, %v2114
  %v2449 = vpack.c.b16 %v2117, %v2115
  %v2450 = vpack.c.b16 %v2120, %v2118
  %v2451 = vpack.c.b16 %v2121, %v2119
  %v2452 = vpack.c.b16 %v2124, %v2122
  %v2453 = vpack.c.b16 %v2125, %v2123
  %v2454 = vpack.c.b16 %v2128, %v2126
  %v2455 = vpack.c.b16 %v2129, %v2127
  %v2456 = vpack.c.b16 %v2132, %v2130
  %v2457 = vpack.c.b16 %v2133, %v2131
  %v2458 = vpack.c.b16 %v2136, %v2134
  %v2459 = vpack.c.b16 %v2137, %v2135
  %v2460 = vpack.c.b16 %v2140, %v2138
  %v2461 = vpack.c.b16 %v2141, %v2139
  %v2462 = vpack.c.b16 %v2144, %v2142
  %v2463 = vpack.c.b16 %v2145, %v2143
  %v2464 = vpack.c.b16 %v2148, %v2146
  %v2465 = vpack.c.b16 %v2149, %v2147
  %v2466 = vpack.c.b16 %v2152, %v2150
  %v2467 = vpack.c.b16 %v2153, %v2151
  %v2468 = vpack.c.b16 %v2156, %v2154
  %v2469 = vpack.c.b16 %v2157, %v2155
  %v2470 = vpack.c.b16 %v2160, %v2158
  %v2471 = vpack.c.b16 %v2161, %v2159
  %v2472 = vpack.c.b16 %v2164, %v2162
  %v2473 = vpack.c.b16 %v2165, %v2163
  %v2474 = vpack.c.b16 %v2168, %v2166
  %v2475 = vpack.c.b16 %v2169, %v2167
  %v2476 = vpack.c.b16 %v2172, %v2170
  %v2477 = vpack.c.b16 %v2173, %v2171
  %v2478 = vpack.c.b16 %v2176, %v2174
  %v2479 = vpack.c.b16 %v2177, %v2175
  %v2480 = vpack.c.b16 %v2180, %v2178
  %v2481 = vpack.c.b16 %v2181, %v2179
  %v2482 = vpack.c.b16 %v2184, %v2182
  %v2483 = vpack.c.b16 %v2185, %v2183
  %v2484 = vpack.c.b16 %v2188, %v2186
  %v2485 = vpack.c.b16 %v2189, %v2187
  %v2486 = vpack.c.b16 %v2192, %v2190
  %v2487 = vpack.c.b16 %v2193, %v2191
  %v2488 = vpack.c.b16 %v2196, %v2194
  %v2489 = vpack.c.b16 %v2197, %v2195
  %v2490 = vpack.c.b16 %v2200, %v2198
  %v2491 = vpack.c.b16 %v2201, %v2199
  %v2492 = vpack.c.b16 %v2204, %v2202
  %v2493 = vpack.c.b16 %v2205, %v2203
  %v2494 = vpack.c.b16 %v2208, %v2206
  %v2495 = vpack.c.b16 %v2209, %v2207
  %v2496 = vpack.c.b16 %v2212, %v2210
  %v2497 = vpack.c.b16 %v2213, %v2211
  %v2498 = vpack.c.b16 %v2216, %v2214
  %v2499 = vpack.c.b16 %v2217, %v2215
  %v2500 = vpack.c.b16 %v2220, %v2218
  %v2501 = vpack.c.b16 %v2221, %v2219
  %v2502 = vpack.c.b16 %v2224, %v2222
  %v2503 = vpack.c.b16 %v2225, %v2223
  %v2504 = vpack.c.b16 %v2228, %v2226
  %v2505 = vpack.c.b16 %v2229, %v2227
  %v2506 = vpack.c.b16 %v2232, %v2230
  %v2507 = vpack.c.b16 %v2233, %v2231
  %v2508 = vpack.c.b16 %v2236, %v2234
  %v2509 = vpack.c.b16 %v2237, %v2235
  %v2510 = vpack.c.b16 %v2240, %v2238
  %v2511 = vpack.c.b16 %v2241, %v2239
  %v2512 = vpack.c.b16 %v2244, %v2242
  %v2513 = vpack.c.b16 %v2245, %v2243
  %v2514 = vpack.c.b16 %v2248, %v2246
  %v2515 = vpack.c.b16 %v2249, %v2247
  %v2516 = vpack.c.b16 %v2252, %v2250
  %v2517 = vpack.c.b16 %v2253, %v2251
  %v2518 = vpack.c.b16 %v2256, %v2254
  %v2519 = vpack.c.b16 %v2257, %v2255
  %v2520 = vpack.c.b16 %v2260, %v2258
  %v2521 = vpack.c.b16 %v2261, %v2259
  %v2522 = vpack.c.b16 %v2264, %v2262
  %v2523 = vpack.c.b16 %v2265, %v2263
  %v2524 = vpack.c.b16 %v2268, %v2266
  %v2525 = vpack.c.b16 %v2269, %v2267
  %2782 = vmatprep.subr.bf16.mxu0 %v2271
  %2783 = vmatpush1.bf16.msra.mxu0 %v2270
  %2784 = vmatprep.subr.bf16.mxu0 %v2273
  %2785 = vmatpush1.bf16.msra.mxu0 %v2272
  %2786 = vmatprep.subr.bf16.mxu0 %v2275
  %2787 = vmatpush1.bf16.msra.mxu0 %v2274
  %2788 = vmatprep.subr.bf16.mxu0 %v2277
  %2789 = vmatpush1.bf16.msra.mxu0 %v2276
  %2790 = vmatprep.subr.bf16.mxu0 %v2279
  %2791 = vmatpush1.bf16.msra.mxu0 %v2278
  %2792 = vmatprep.subr.bf16.mxu0 %v2281
  %2793 = vmatpush1.bf16.msra.mxu0 %v2280
  %2794 = vmatprep.subr.bf16.mxu0 %v2283
  %2795 = vmatpush1.bf16.msra.mxu0 %v2282
  %2796 = vmatprep.subr.bf16.mxu0 %v2285
  %2797 = vmatpush1.bf16.msra.mxu0 %v2284
  %2798 = vmatprep.subr.bf16.mxu0 %v2287
  %2799 = vmatpush1.bf16.msra.mxu0 %v2286
  %2800 = vmatprep.subr.bf16.mxu0 %v2289
  %2801 = vmatpush1.bf16.msra.mxu0 %v2288
  %2802 = vmatprep.subr.bf16.mxu0 %v2291
  %2803 = vmatpush1.bf16.msra.mxu0 %v2290
  %2804 = vmatprep.subr.bf16.mxu0 %v2293
  %2805 = vmatpush1.bf16.msra.mxu0 %v2292
  %2806 = vmatprep.subr.bf16.mxu0 %v2295
  %2807 = vmatpush1.bf16.msra.mxu0 %v2294
  %2808 = vmatprep.subr.bf16.mxu0 %v2297
  %2809 = vmatpush1.bf16.msra.mxu0 %v2296
  %2810 = vmatprep.subr.bf16.mxu0 %v2299
  %2811 = vmatpush1.bf16.msra.mxu0 %v2298
  %2812 = vmatprep.subr.bf16.mxu0 %v2301
  %2813 = vmatpush1.bf16.msra.mxu0 %v2300
  %2814 = vmatprep.mubr.bf16.mxu0 %v1219
  %2815 = vmatmul.mubr.bf16.gmra.mrb[0].mxu0 %v1218
  %v2816 = vpop.f32.mrb[0].mxu0
  %v2817 = vadd.f32 %v1495, %v2816
  %v2818 = vpop.f32.mrb[0].mxu0
  %v2819 = vadd.f32 %v1499, %v2818
  %v2820 = vpop.f32.mrb[0].mxu0
  %v2821 = vpop.f32.mrb[0].mxu0
  %2822 = vdwg.mxu0
  %2823 = vmatprep.subr.bf16.mxu0 %v2303
  %2824 = vmatpush1.bf16.msra.mxu0 %v2302
  %2825 = vmatprep.subr.bf16.mxu0 %v2305
  %2826 = vmatpush1.bf16.msra.mxu0 %v2304
  %2827 = vmatprep.subr.bf16.mxu0 %v2307
  %2828 = vmatpush1.bf16.msra.mxu0 %v2306
  %2829 = vmatprep.subr.bf16.mxu0 %v2309
  %2830 = vmatpush1.bf16.msra.mxu0 %v2308
  %2831 = vmatprep.subr.bf16.mxu0 %v2311
  %2832 = vmatpush1.bf16.msra.mxu0 %v2310
  %2833 = vmatprep.subr.bf16.mxu0 %v2313
  %2834 = vmatpush1.bf16.msra.mxu0 %v2312
  %2835 = vmatprep.subr.bf16.mxu0 %v2315
  %2836 = vmatpush1.bf16.msra.mxu0 %v2314
  %2837 = vmatprep.subr.bf16.mxu0 %v2317
  %2838 = vmatpush1.bf16.msra.mxu0 %v2316
  %2839 = vmatprep.subr.bf16.mxu0 %v2319
  %2840 = vmatpush1.bf16.msra.mxu0 %v2318
  %2841 = vmatprep.subr.bf16.mxu0 %v2321
  %2842 = vmatpush1.bf16.msra.mxu0 %v2320
  %2843 = vmatprep.subr.bf16.mxu0 %v2323
  %2844 = vmatpush1.bf16.msra.mxu0 %v2322
  %2845 = vmatprep.subr.bf16.mxu0 %v2325
  %2846 = vmatpush1.bf16.msra.mxu0 %v2324
  %2847 = vmatprep.subr.bf16.mxu0 %v2327
  %2848 = vmatpush1.bf16.msra.mxu0 %v2326
  %2849 = vmatprep.subr.bf16.mxu0 %v2329
  %2850 = vmatpush1.bf16.msra.mxu0 %v2328
  %2851 = vmatprep.subr.bf16.mxu0 %v2331
  %2852 = vmatpush1.bf16.msra.mxu0 %v2330
  %2853 = vmatprep.subr.bf16.mxu0 %v2333
  %2854 = vmatpush1.bf16.msra.mxu0 %v2332
  %2855 = vmatprep.mubr.bf16.mxu0 %v1221
  %2856 = vmatmul.mubr.bf16.gmra.mrb[0].mxu0 %v1220
  %v2857 = vpop.f32.mrb[0].mxu0
  %v2858 = vadd.f32 %v2817, %v2857
  %v2859 = vpop.f32.mrb[0].mxu0
  %v2860 = vadd.f32 %v2819, %v2859
  %v2861 = vpop.f32.mrb[0].mxu0
  %v2862 = vpop.f32.mrb[0].mxu0
  %2863 = vdwg.mxu0
  %2864 = vmatprep.subr.bf16.mxu0 %v2335
  %2865 = vmatpush1.bf16.msra.mxu0 %v2334
  %2866 = vmatprep.subr.bf16.mxu0 %v2337
  %2867 = vmatpush1.bf16.msra.mxu0 %v2336
  %2868 = vmatprep.subr.bf16.mxu0 %v2339
  %2869 = vmatpush1.bf16.msra.mxu0 %v2338
  %2870 = vmatprep.subr.bf16.mxu0 %v2341
  %2871 = vmatpush1.bf16.msra.mxu0 %v2340
  %2872 = vmatprep.subr.bf16.mxu0 %v2343
  %2873 = vmatpush1.bf16.msra.mxu0 %v2342
  %2874 = vmatprep.subr.bf16.mxu0 %v2345
  %2875 = vmatpush1.bf16.msra.mxu0 %v2344
  %2876 = vmatprep.subr.bf16.mxu0 %v2347
  %2877 = vmatpush1.bf16.msra.mxu0 %v2346
  %2878 = vmatprep.subr.bf16.mxu0 %v2349
  %2879 = vmatpush1.bf16.msra.mxu0 %v2348
  %2880 = vmatprep.subr.bf16.mxu0 %v2351
  %2881 = vmatpush1.bf16.msra.mxu0 %v2350
  %2882 = vmatprep.subr.bf16.mxu0 %v2353
  %2883 = vmatpush1.bf16.msra.mxu0 %v2352
  %2884 = vmatprep.subr.bf16.mxu0 %v2355
  %2885 = vmatpush1.bf16.msra.mxu0 %v2354
  %2886 = vmatprep.subr.bf16.mxu0 %v2357
  %2887 = vmatpush1.bf16.msra.mxu0 %v2356
  %2888 = vmatprep.subr.bf16.mxu0 %v2359
  %2889 = vmatpush1.bf16.msra.mxu0 %v2358
  %2890 = vmatprep.subr.bf16.mxu0 %v2361
  %2891 = vmatpush1.bf16.msra.mxu0 %v2360
  %2892 = vmatprep.subr.bf16.mxu0 %v2363
  %2893 = vmatpush1.bf16.msra.mxu0 %v2362
  %2894 = vmatprep.subr.bf16.mxu0 %v2365
  %2895 = vmatpush1.bf16.msra.mxu0 %v2364
  %2896 = vmatprep.mubr.bf16.mxu0 %v1223
  %2897 = vmatmul.mubr.bf16.gmra.mrb[0].mxu0 %v1222
  %v2898 = vpop.f32.mrb[0].mxu0
  %v2899 = vadd.f32 %v2858, %v2898
  %v2900 = vpop.f32.mrb[0].mxu0
  %v2901 = vadd.f32 %v2860, %v2900
  %v2902 = vpop.f32.mrb[0].mxu0
  %v2903 = vpop.f32.mrb[0].mxu0
  %2904 = vdwg.mxu0
  %2905 = vmatprep.subr.bf16.mxu0 %v2367
  %2906 = vmatpush1.bf16.msra.mxu0 %v2366
  %2907 = vmatprep.subr.bf16.mxu0 %v2369
  %2908 = vmatpush1.bf16.msra.mxu0 %v2368
  %2909 = vmatprep.subr.bf16.mxu0 %v2371
  %2910 = vmatpush1.bf16.msra.mxu0 %v2370
  %2911 = vmatprep.subr.bf16.mxu0 %v2373
  %2912 = vmatpush1.bf16.msra.mxu0 %v2372
  %2913 = vmatprep.subr.bf16.mxu0 %v2375
  %2914 = vmatpush1.bf16.msra.mxu0 %v2374
  %2915 = vmatprep.subr.bf16.mxu0 %v2377
  %2916 = vmatpush1.bf16.msra.mxu0 %v2376
  %2917 = vmatprep.subr.bf16.mxu0 %v2379
  %2918 = vmatpush1.bf16.msra.mxu0 %v2378
  %2919 = vmatprep.subr.bf16.mxu0 %v2381
  %2920 = vmatpush1.bf16.msra.mxu0 %v2380
  %2921 = vmatprep.subr.bf16.mxu0 %v2383
  %2922 = vmatpush1.bf16.msra.mxu0 %v2382
  %2923 = vmatprep.subr.bf16.mxu0 %v2385
  %2924 = vmatpush1.bf16.msra.mxu0 %v2384
  %2925 = vmatprep.subr.bf16.mxu0 %v2387
  %2926 = vmatpush1.bf16.msra.mxu0 %v2386
  %2927 = vmatprep.subr.bf16.mxu0 %v2389
  %2928 = vmatpush1.bf16.msra.mxu0 %v2388
  %2929 = vmatprep.subr.bf16.mxu0 %v2391
  %2930 = vmatpush1.bf16.msra.mxu0 %v2390
  %2931 = vmatprep.subr.bf16.mxu0 %v2393
  %2932 = vmatpush1.bf16.msra.mxu0 %v2392
  %2933 = vmatprep.subr.bf16.mxu0 %v2395
  %2934 = vmatpush1.bf16.msra.mxu0 %v2394
  %2935 = vmatprep.subr.bf16.mxu0 %v2397
  %2936 = vmatpush1.bf16.msra.mxu0 %v2396
  %2937 = vmatprep.mubr.bf16.mxu0 %v1225
  %2938 = vmatmul.mubr.bf16.gmra.mrb[0].mxu0 %v1224
  %v2939 = vpop.f32.mrb[0].mxu0
  %v2940 = vadd.f32 %v2899, %v2939
  %v2941 = vpop.f32.mrb[0].mxu0
  %v2942 = vadd.f32 %v2901, %v2941
  %v2943 = vpop.f32.mrb[0].mxu0
  %v2944 = vpop.f32.mrb[0].mxu0
  %2945 = vdwg.mxu0
  %2946 = vmatprep.subr.bf16.mxu0 %v2399
  %2947 = vmatpush1.bf16.msra.mxu0 %v2398
  %2948 = vmatprep.subr.bf16.mxu0 %v2401
  %2949 = vmatpush1.bf16.msra.mxu0 %v2400
  %2950 = vmatprep.subr.bf16.mxu0 %v2403
  %2951 = vmatpush1.bf16.msra.mxu0 %v2402
  %2952 = vmatprep.subr.bf16.mxu0 %v2405
  %2953 = vmatpush1.bf16.msra.mxu0 %v2404
  %2954 = vmatprep.subr.bf16.mxu0 %v2407
  %2955 = vmatpush1.bf16.msra.mxu0 %v2406
  %2956 = vmatprep.subr.bf16.mxu0 %v2409
  %2957 = vmatpush1.bf16.msra.mxu0 %v2408
  %2958 = vmatprep.subr.bf16.mxu0 %v2411
  %2959 = vmatpush1.bf16.msra.mxu0 %v2410
  %2960 = vmatprep.subr.bf16.mxu0 %v2413
  %2961 = vmatpush1.bf16.msra.mxu0 %v2412
  %2962 = vmatprep.subr.bf16.mxu0 %v2415
  %2963 = vmatpush1.bf16.msra.mxu0 %v2414
  %2964 = vmatprep.subr.bf16.mxu0 %v2417
  %2965 = vmatpush1.bf16.msra.mxu0 %v2416
  %2966 = vmatprep.subr.bf16.mxu0 %v2419
  %2967 = vmatpush1.bf16.msra.mxu0 %v2418
  %2968 = vmatprep.subr.bf16.mxu0 %v2421
  %2969 = vmatpush1.bf16.msra.mxu0 %v2420
  %2970 = vmatprep.subr.bf16.mxu0 %v2423
  %2971 = vmatpush1.bf16.msra.mxu0 %v2422
  %2972 = vmatprep.subr.bf16.mxu0 %v2425
  %2973 = vmatpush1.bf16.msra.mxu0 %v2424
  %2974 = vmatprep.subr.bf16.mxu0 %v2427
  %2975 = vmatpush1.bf16.msra.mxu0 %v2426
  %2976 = vmatprep.subr.bf16.mxu0 %v2429
  %2977 = vmatpush1.bf16.msra.mxu0 %v2428
  %2978 = vmatprep.mubr.bf16.mxu0 %v1227
  %2979 = vmatmul.mubr.bf16.gmra.mrb[0].mxu0 %v1226
  %v2980 = vpop.f32.mrb[0].mxu0
  %v2981 = vadd.f32 %v2940, %v2980
  %v2982 = vpop.f32.mrb[0].mxu0
  %v2983 = vadd.f32 %v2942, %v2982
  %v2984 = vpop.f32.mrb[0].mxu0
  %v2985 = vpop.f32.mrb[0].mxu0
  %2986 = vdwg.mxu0
  %2987 = vmatprep.subr.bf16.mxu0 %v2431
  %2988 = vmatpush1.bf16.msra.mxu0 %v2430
  %2989 = vmatprep.subr.bf16.mxu0 %v2433
  %2990 = vmatpush1.bf16.msra.mxu0 %v2432
  %2991 = vmatprep.subr.bf16.mxu0 %v2435
  %2992 = vmatpush1.bf16.msra.mxu0 %v2434
  %2993 = vmatprep.subr.bf16.mxu0 %v2437
  %2994 = vmatpush1.bf16.msra.mxu0 %v2436
  %2995 = vmatprep.subr.bf16.mxu0 %v2439
  %2996 = vmatpush1.bf16.msra.mxu0 %v2438
  %2997 = vmatprep.subr.bf16.mxu0 %v2441
  %2998 = vmatpush1.bf16.msra.mxu0 %v2440
  %2999 = vmatprep.subr.bf16.mxu0 %v2443
  %3000 = vmatpush1.bf16.msra.mxu0 %v2442
  %3001 = vmatprep.subr.bf16.mxu0 %v2445
  %3002 = vmatpush1.bf16.msra.mxu0 %v2444
  %3003 = vmatprep.subr.bf16.mxu0 %v2447
  %3004 = vmatpush1.bf16.msra.mxu0 %v2446
  %3005 = vmatprep.subr.bf16.mxu0 %v2449
  %3006 = vmatpush1.bf16.msra.mxu0 %v2448
  %3007 = vmatprep.subr.bf16.mxu0 %v2451
  %3008 = vmatpush1.bf16.msra.mxu0 %v2450
  %3009 = vmatprep.subr.bf16.mxu0 %v2453
  %3010 = vmatpush1.bf16.msra.mxu0 %v2452
  %3011 = vmatprep.subr.bf16.mxu0 %v2455
  %3012 = vmatpush1.bf16.msra.mxu0 %v2454
  %3013 = vmatprep.subr.bf16.mxu0 %v2457
  %3014 = vmatpush1.bf16.msra.mxu0 %v2456
  %3015 = vmatprep.subr.bf16.mxu0 %v2459
  %3016 = vmatpush1.bf16.msra.mxu0 %v2458
  %3017 = vmatprep.subr.bf16.mxu0 %v2461
  %3018 = vmatpush1.bf16.msra.mxu0 %v2460
  %3019 = vmatprep.mubr.bf16.mxu0 %v1229
  %3020 = vmatmul.mubr.bf16.gmra.mrb[0].mxu0 %v1228
  %v3021 = vpop.f32.mrb[0].mxu0
  %v3022 = vadd.f32 %v2981, %v3021
  %v3023 = vpop.f32.mrb[0].mxu0
  %v3024 = vadd.f32 %v2983, %v3023
  %v3025 = vpop.f32.mrb[0].mxu0
  %v3026 = vpop.f32.mrb[0].mxu0
  %3027 = vdwg.mxu0
  %3028 = vmatprep.subr.bf16.mxu0 %v2463
  %3029 = vmatpush1.bf16.msra.mxu0 %v2462
  %3030 = vmatprep.subr.bf16.mxu0 %v2465
  %3031 = vmatpush1.bf16.msra.mxu0 %v2464
  %3032 = vmatprep.subr.bf16.mxu0 %v2467
  %3033 = vmatpush1.bf16.msra.mxu0 %v2466
  %3034 = vmatprep.subr.bf16.mxu0 %v2469
  %3035 = vmatpush1.bf16.msra.mxu0 %v2468
  %3036 = vmatprep.subr.bf16.mxu0 %v2471
  %3037 = vmatpush1.bf16.msra.mxu0 %v2470
  %3038 = vmatprep.subr.bf16.mxu0 %v2473
  %3039 = vmatpush1.bf16.msra.mxu0 %v2472
  %3040 = vmatprep.subr.bf16.mxu0 %v2475
  %3041 = vmatpush1.bf16.msra.mxu0 %v2474
  %3042 = vmatprep.subr.bf16.mxu0 %v2477
  %3043 = vmatpush1.bf16.msra.mxu0 %v2476
  %3044 = vmatprep.subr.bf16.mxu0 %v2479
  %3045 = vmatpush1.bf16.msra.mxu0 %v2478
  %3046 = vmatprep.subr.bf16.mxu0 %v2481
  %3047 = vmatpush1.bf16.msra.mxu0 %v2480
  %3048 = vmatprep.subr.bf16.mxu0 %v2483
  %3049 = vmatpush1.bf16.msra.mxu0 %v2482
  %3050 = vmatprep.subr.bf16.mxu0 %v2485
  %3051 = vmatpush1.bf16.msra.mxu0 %v2484
  %3052 = vmatprep.subr.bf16.mxu0 %v2487
  %3053 = vmatpush1.bf16.msra.mxu0 %v2486
  %3054 = vmatprep.subr.bf16.mxu0 %v2489
  %3055 = vmatpush1.bf16.msra.mxu0 %v2488
  %3056 = vmatprep.subr.bf16.mxu0 %v2491
  %3057 = vmatpush1.bf16.msra.mxu0 %v2490
  %3058 = vmatprep.subr.bf16.mxu0 %v2493
  %3059 = vmatpush1.bf16.msra.mxu0 %v2492
  %3060 = vmatprep.mubr.bf16.mxu0 %v1231
  %3061 = vmatmul.mubr.bf16.gmra.mrb[0].mxu0 %v1230
  %v3062 = vpop.f32.mrb[0].mxu0
  %v3063 = vadd.f32 %v3022, %v3062
  %v3064 = vpop.f32.mrb[0].mxu0
  %v3065 = vadd.f32 %v3024, %v3064
  %v3066 = vpop.f32.mrb[0].mxu0
  %v3067 = vpop.f32.mrb[0].mxu0
  %3068 = vdwg.mxu0
  %3069 = vmatprep.subr.bf16.mxu0 %v2495
  %3070 = vmatpush1.bf16.msra.mxu0 %v2494
  %3071 = vmatprep.subr.bf16.mxu0 %v2497
  %3072 = vmatpush1.bf16.msra.mxu0 %v2496
  %3073 = vmatprep.subr.bf16.mxu0 %v2499
  %3074 = vmatpush1.bf16.msra.mxu0 %v2498
  %3075 = vmatprep.subr.bf16.mxu0 %v2501
  %3076 = vmatpush1.bf16.msra.mxu0 %v2500
  %3077 = vmatprep.subr.bf16.mxu0 %v2503
  %3078 = vmatpush1.bf16.msra.mxu0 %v2502
  %3079 = vmatprep.subr.bf16.mxu0 %v2505
  %3080 = vmatpush1.bf16.msra.mxu0 %v2504
  %3081 = vmatprep.subr.bf16.mxu0 %v2507
  %3082 = vmatpush1.bf16.msra.mxu0 %v2506
  %3083 = vmatprep.subr.bf16.mxu0 %v2509
  %3084 = vmatpush1.bf16.msra.mxu0 %v2508
  %3085 = vmatprep.subr.bf16.mxu0 %v2511
  %3086 = vmatpush1.bf16.msra.mxu0 %v2510
  %3087 = vmatprep.subr.bf16.mxu0 %v2513
  %3088 = vmatpush1.bf16.msra.mxu0 %v2512
  %3089 = vmatprep.subr.bf16.mxu0 %v2515
  %3090 = vmatpush1.bf16.msra.mxu0 %v2514
  %3091 = vmatprep.subr.bf16.mxu0 %v2517
  %3092 = vmatpush1.bf16.msra.mxu0 %v2516
  %3093 = vmatprep.subr.bf16.mxu0 %v2519
  %3094 = vmatpush1.bf16.msra.mxu0 %v2518
  %3095 = vmatprep.subr.bf16.mxu0 %v2521
  %3096 = vmatpush1.bf16.msra.mxu0 %v2520
  %3097 = vmatprep.subr.bf16.mxu0 %v2523
  %3098 = vmatpush1.bf16.msra.mxu0 %v2522
  %3099 = vmatprep.subr.bf16.mxu0 %v2525
  %3100 = vmatpush1.bf16.msra.mxu0 %v2524
  %3101 = vmatprep.mubr.bf16.mxu0 %v1233
  %3102 = vmatmul.mubr.bf16.gmra.mrb[0].mxu0 %v1232
  %v3103 = vpop.f32.mrb[0].mxu0
  %v3104 = vadd.f32 %v3063, %v3103
  %v3105 = vpop.f32.mrb[0].mxu0
  %v3106 = vadd.f32 %v3065, %v3105
  %v3107 = vpop.f32.mrb[0].mxu0
  %v3108 = vpop.f32.mrb[0].mxu0
  %3109 = vdwg.mxu0
  %v3110 = vpack.c.bf16 %v3104, %v3104
  %v3111 = vpack.c.bf16 %v3106, %v3106
  %v3114 = vunpack.c.l.b16 %v3110
  %v3115 = vunpack.c.l.b16 %v3111
  %v3116 = vpack.c.b16 %v3115, %v3114
  %3118 = vst [vmem:[%s5] sm:$0xff] %v3116
  // Predicated region
  $region22: #{encoder_projector_concat.1} parent=0 // pred_check
    _
  $region23: #{encoder_projector_concat.1} parent=0 // pred_check_branch
    %3120 = sbr.rel (0) target = $region25
  $region24: #{encoder_projector_concat.1} parent=0 // pred_region
    _
  $region25: #{encoder_projector_concat.1} parent=0 // pred_fallthru
    _
  // Predicated region
  $region26: #{encoder_projector_concat.1} parent=0 // pred_check
    _
  $region27: #{encoder_projector_concat.1} parent=0 // pred_check_branch
    %3122 = sbr.rel (0) target = $region29
  $region28: #{encoder_projector_concat.1} parent=0 // pred_region
    _
  $region29: #{encoder_projector_concat.1} parent=0 // pred_fallthru
    _

</llo_original>
